<compile_context>
chip_gen: v6e
topology: v6e:2x2x1
jax: 0.10.0
libtpu: 0.0.40
codegen_flags: <defaults>
</compile_context>

<pallas_src>
import jax
import jax.numpy as jnp
from jax.experimental import pallas as pl
from jax.experimental.pallas import tpu as pltpu  # noqa: F401  (TPU backend assumed)

# ----------------------------- configuration -------------------------------
BATCH = 2
SEQ = 8
HIDDEN = 32
NUM_HEADS = 4
ATT_SIZE = HIDDEN // NUM_HEADS          # 8
SCALE = ATT_SIZE ** (-0.5)
ROWS = BATCH * SEQ                      # 16 (batch folded into rows)

# Parameter-slab layout (row offsets are multiples of 8 sublanes).
ROW_WQKV = 0                            # rows  0:32, cols 0:96  -> Wqkv
ROW_BIAS = 32                           # row  32 = bqkv (0:96), row 33 = bo (0:32)
ROW_WO = 40                             # rows 40:72, cols 0:32  -> Wo
ROW_MASK = 72                           # rows 72:88, cols 0:16  -> block-diag mask
SLAB_ROWS = 88
SLAB_COLS = 3 * HIDDEN                  # 96


# ------------------------------- Pallas kernel ------------------------------
def mha_kernel(x_ref, slab_ref, out_ref):
    # x_ref:    (ROWS, HIDDEN)        batch folded into rows
    # slab_ref: (SLAB_ROWS, SLAB_COLS) all params + mask, packed host-side once
    x = x_ref[...]                                                    # (R, H)

    wqkv = slab_ref[ROW_WQKV:ROW_WQKV + HIDDEN, :]                    # (32, 96)
    bqkv = slab_ref[ROW_BIAS:ROW_BIAS + 1, :]                         # (1, 96)
    bo = slab_ref[ROW_BIAS + 1:ROW_BIAS + 2, 0:HIDDEN]                # (1, 32)
    wo = slab_ref[ROW_WO:ROW_WO + HIDDEN, 0:HIDDEN]                   # (32, 32)
    mask = slab_ref[ROW_MASK:ROW_MASK + ROWS, 0:ROWS]                 # (16, 16)

    # One fused QKV projection: (16,32)x(32,96).  Softmax scale is folded into
    # the Q weight columns / bias on the host.
    qkv = jnp.dot(x, wqkv, preferred_element_type=jnp.float32) + bqkv  # (R, 96)

    q = qkv[:, 0:HIDDEN]                    # contiguous 32-lane slices
    k = qkv[:, HIDDEN:2 * HIDDEN]
    v = qkv[:, 2 * HIDDEN:3 * HIDDEN]

    # Head split + head-leading layout for the (unavoidably) per-head matmuls.
    qh = q.reshape(ROWS, NUM_HEADS, ATT_SIZE).transpose(1, 0, 2)      # (NH, R, d)
    kh = k.reshape(ROWS, NUM_HEADS, ATT_SIZE).transpose(1, 0, 2)
    vh = v.reshape(ROWS, NUM_HEADS, ATT_SIZE).transpose(1, 0, 2)

    # Head-batched scores over all folded rows; cross-batch entries carry -1e30
    # from the block-diagonal mask, so the softmax is exactly per batch element.
    s = jnp.einsum('hqd,hkd->hqk', qh, kh,
                   preferred_element_type=jnp.float32)                # (NH, R, R)
    s = s + mask[None]                                                # bcast heads
    s = s - jnp.max(s, axis=-1, keepdims=True)
    p = jnp.exp(s)
    p = p / jnp.sum(p, axis=-1, keepdims=True)      # exact divide (per review)

    ctx = jnp.einsum('hqk,hkd->hqd', p, vh,
                     preferred_element_type=jnp.float32)              # (NH, R, d)

    # Concat heads on lanes (== torch transpose+view) and ONE output matmul.
    ctx2 = ctx.transpose(1, 0, 2).reshape(ROWS, NUM_HEADS * ATT_SIZE)  # (R, 32)
    out = jnp.dot(ctx2, wo, preferred_element_type=jnp.float32) + bo   # (R, H)
    out_ref[...] = out.astype(out_ref.dtype)


# ------------------------ one-time host-side packing -------------------------
def pack_operands(params, attention_mask):
    """Pack all weights/biases + the block-diagonal attention mask into a single
    2-D f32 slab (one HBM->VMEM DMA at kernel launch).  Call ONCE and reuse."""
    wq, bq, wk, bk, wv, bv, wo, bo = params

    # [Q(all heads)*scale | K(all heads) | V(all heads)] column order.
    wqkv = jnp.concatenate([wq * SCALE, wk, wv], axis=1)              # (H, 3H)
    bqkv = jnp.concatenate([bq * SCALE, bk, bv], axis=1)              # (1, 3H)

    # Block-diagonal additive mask over folded rows: same-batch -> given mask,
    # cross-batch -> -1e30 (vanishes exactly in softmax).
    same_batch = jnp.eye(BATCH, dtype=bool)[:, None, :, None]         # (B,1,B,1)
    fullmask = jnp.where(same_batch, attention_mask[:, :, None, :],
                         jnp.float32(-1e30)).reshape(ROWS, ROWS)

    slab = jnp.zeros((SLAB_ROWS, SLAB_COLS), jnp.float32)
    slab = slab.at[ROW_WQKV:ROW_WQKV + HIDDEN, :].set(wqkv)
    slab = slab.at[ROW_BIAS, :].set(bqkv[0])
    slab = slab.at[ROW_BIAS + 1, 0:HIDDEN].set(bo[0])
    slab = slab.at[ROW_WO:ROW_WO + HIDDEN, 0:HIDDEN].set(wo)
    slab = slab.at[ROW_MASK:ROW_MASK + ROWS, 0:ROWS].set(fullmask)
    return slab


# ------------------------------- jitted forward ------------------------------
@jax.jit
def multi_head_attention(x, slab):
    """x: (B, S, H) f32; slab: pre-packed operands from pack_operands()."""
    B, S, H = x.shape
    x2d = x.reshape(B * S, H)
    out2d = pl.pallas_call(
        mha_kernel,
        out_shape=jax.ShapeDtypeStruct((B * S, H), jnp.float32),
    )(x2d, slab)
    return out2d.reshape(B, S, H)


# --------------------------- pure-JAX reference ------------------------------
def ref_mha(x, attention_mask, params):
    wq, bq, wk, bk, wv, bv, wo, bo = params
    B, S, H = x.shape
    d = ATT_SIZE
    q = (x @ wq + bq).reshape(B, S, NUM_HEADS, d).transpose(0, 2, 1, 3)
    k = (x @ wk + bk).reshape(B, S, NUM_HEADS, d).transpose(0, 2, 1, 3)
    v = (x @ wv + bv).reshape(B, S, NUM_HEADS, d).transpose(0, 2, 1, 3)
    s = jnp.einsum('bhqd,bhkd->bhqk', q * SCALE, k) + attention_mask[:, None]
    p = jax.nn.softmax(s, axis=-1)
    ctx = jnp.einsum('bhqk,bhkd->bhqd', p, v).transpose(0, 2, 1, 3).reshape(B, S, H)
    return ctx @ wo + bo


# ------------------------------- main ----------------------------------------
if __name__ == "__main__":
    key = jax.random.PRNGKey(0)
    keys = jax.random.split(key, 11)

    # Deterministic parameter init (weights stored as (in, out) so the math is
    # x @ W; equivalent to torch's x @ weight.T).
    init = lambda k, shape: (jax.random.normal(k, shape, jnp.float32)
                             * (1.0 / jnp.sqrt(HIDDEN)))
    wq = init(keys[0], (HIDDEN, HIDDEN)); bq = init(keys[1], (1, HIDDEN))
    wk = init(keys[2], (HIDDEN, HIDDEN)); bk = init(keys[3], (1, HIDDEN))
    wv = init(keys[4], (HIDDEN, HIDDEN)); bv = init(keys[5], (1, HIDDEN))
    wo = init(keys[6], (HIDDEN, HIDDEN)); bo = init(keys[7], (1, HIDDEN))
    params = (wq, bq, wk, bk, wv, bv, wo, bo)

    # Inputs.
    x = jax.random.normal(keys[8], (BATCH, SEQ, HIDDEN), jnp.float32)
    # Additive attention mask: 0 where allowed, -1e9 where masked.
    mask_bits = jax.random.bernoulli(keys[9], 0.8, (BATCH, SEQ, SEQ))
    attention_mask = jnp.where(mask_bits, 0.0, -1e9).astype(jnp.float32)

    # One-time packing (hoisted out of the per-call path).
    slab = jax.block_until_ready(pack_operands(params, attention_mask))

    out = multi_head_attention(x, slab)
    out = jax.block_until_ready(out)

    ref = ref_mha(x, attention_mask, params)
    assert out.shape == (BATCH, SEQ, HIDDEN)
    # Exact softmax divide; tolerance only covers MXU-vs-XLA f32 rounding.
    assert jnp.allclose(out, ref, atol=2e-3, rtol=2e-3), "mismatch vs reference"

    print("KERNEL_OK")
</pallas_src>

<mosaic_0001>
module attributes {stable_mosaic.version = 11 : i64} {
  func.func @mha_kernel(%arg0: memref<16x32xf32, #tpu.memory_space<vmem>>, %arg1: memref<88x96xf32, #tpu.memory_space<vmem>>, %arg2: memref<16x32xf32, #tpu.memory_space<vmem>>) attributes {dimension_semantics = [], scalar_prefetch = 0 : i64, scratch_operands = 0 : i64, tpu.core_type = #tpu.core_type<tc>} {
    %c0 = arith.constant 0 : index
    %c0_0 = arith.constant 0 : index
    %0 = vector.load %arg0[%c0, %c0_0] : memref<16x32xf32, #tpu.memory_space<vmem>>, vector<16x32xf32>
    %c0_1 = arith.constant 0 : index
    %c0_2 = arith.constant 0 : index
    %1 = vector.load %arg1[%c0_1, %c0_2] : memref<88x96xf32, #tpu.memory_space<vmem>>, vector<32x96xf32>
    %c32 = arith.constant 32 : index
    %c0_3 = arith.constant 0 : index
    %2 = vector.load %arg1[%c32, %c0_3] : memref<88x96xf32, #tpu.memory_space<vmem>>, vector<1x96xf32>
    %c33 = arith.constant 33 : index
    %c0_4 = arith.constant 0 : index
    %3 = vector.load %arg1[%c33, %c0_4] : memref<88x96xf32, #tpu.memory_space<vmem>>, vector<1x32xf32>
    %c40 = arith.constant 40 : index
    %c0_5 = arith.constant 0 : index
    %4 = vector.load %arg1[%c40, %c0_5] : memref<88x96xf32, #tpu.memory_space<vmem>>, vector<32x32xf32>
    %c72 = arith.constant 72 : index
    %c0_6 = arith.constant 0 : index
    %5 = vector.load %arg1[%c72, %c0_6] : memref<88x96xf32, #tpu.memory_space<vmem>>, vector<16x16xf32>
    %cst = arith.constant dense<0.000000e+00> : vector<16x96xf32>
    %6 = tpu.matmul %0, %1, %cst {dimension_numbers = #tpu.dot_dimension_numbers<[1], [0], [0], [1], [0, 0, 1, 1], [], []>} : vector<16x32xf32>, vector<32x96xf32>, vector<16x96xf32> -> vector<16x96xf32>
    %7 = vector.broadcast %2 : vector<1x96xf32> to vector<16x96xf32>
    %8 = arith.addf %6, %7 : vector<16x96xf32>
    %9 = vector.extract_strided_slice %8 {offsets = [0, 0], sizes = [16, 32], strides = [1, 1]} : vector<16x96xf32> to vector<16x32xf32>
    %10 = vector.extract_strided_slice %8 {offsets = [0, 32], sizes = [16, 32], strides = [1, 1]} : vector<16x96xf32> to vector<16x32xf32>
    %11 = vector.extract_strided_slice %8 {offsets = [0, 64], sizes = [16, 32], strides = [1, 1]} : vector<16x96xf32> to vector<16x32xf32>
    %12 = vector.shape_cast %9 : vector<16x32xf32> to vector<16x4x8xf32>
    %13 = tpu.transpose %12, [1, 0, 2] : vector<16x4x8xf32> -> vector<4x16x8xf32>
    %14 = vector.shape_cast %10 : vector<16x32xf32> to vector<16x4x8xf32>
    %15 = tpu.transpose %14, [1, 0, 2] : vector<16x4x8xf32> -> vector<4x16x8xf32>
    %16 = vector.shape_cast %11 : vector<16x32xf32> to vector<16x4x8xf32>
    %17 = tpu.transpose %16, [1, 0, 2] : vector<16x4x8xf32> -> vector<4x16x8xf32>
    "tpu.trace_start"() <{level = 10 : i32, message = "hqd,hkd->hqk"}> : () -> ()
    %cst_7 = arith.constant dense<0.000000e+00> : vector<4x16x16xf32>
    %18 = tpu.matmul %13, %15, %cst_7 {dimension_numbers = #tpu.dot_dimension_numbers<[2], [2], [1], [1], [0, 0, 0, 1, 1, 1], [0], [0]>} : vector<4x16x8xf32>, vector<4x16x8xf32>, vector<4x16x16xf32> -> vector<4x16x16xf32>
    "tpu.trace_stop"() : () -> ()
    %19 = vector.shape_cast %5 : vector<16x16xf32> to vector<1x16x16xf32>
    %20 = vector.broadcast %19 : vector<1x16x16xf32> to vector<4x16x16xf32>
    %21 = arith.addf %18, %20 : vector<4x16x16xf32>
    %cst_8 = arith.constant dense<0xFF800000> : vector<4x16xf32>
    %22 = vector.multi_reduction <maximumf>, %21, %cst_8 [2] : vector<4x16x16xf32> to vector<4x16xf32>
    %23 = vector.shape_cast %22 : vector<4x16xf32> to vector<4x16x1xf32>
    %24 = vector.broadcast %23 : vector<4x16x1xf32> to vector<4x16x16xf32>
    %25 = arith.subf %21, %24 : vector<4x16x16xf32>
    %26 = math.exp %25 : vector<4x16x16xf32>
    %cst_9 = arith.constant dense<0.000000e+00> : vector<4x16xf32>
    %27 = vector.multi_reduction <add>, %26, %cst_9 [2] : vector<4x16x16xf32> to vector<4x16xf32>
    %28 = vector.shape_cast %27 : vector<4x16xf32> to vector<4x16x1xf32>
    %29 = vector.broadcast %28 : vector<4x16x1xf32> to vector<4x16x16xf32>
    %30 = arith.divf %26, %29 : vector<4x16x16xf32>
    "tpu.trace_start"() <{level = 10 : i32, message = "hqk,hkd->hqd"}> : () -> ()
    %cst_10 = arith.constant dense<0.000000e+00> : vector<4x16x8xf32>
    %31 = tpu.matmul %30, %17, %cst_10 {dimension_numbers = #tpu.dot_dimension_numbers<[2], [1], [1], [2], [0, 0, 0, 1, 1, 2], [0], [0]>} : vector<4x16x16xf32>, vector<4x16x8xf32>, vector<4x16x8xf32> -> vector<4x16x8xf32>
    "tpu.trace_stop"() : () -> ()
    %32 = tpu.transpose %31, [1, 0, 2] : vector<4x16x8xf32> -> vector<16x4x8xf32>
    %33 = vector.shape_cast %32 : vector<16x4x8xf32> to vector<16x32xf32>
    %cst_11 = arith.constant dense<0.000000e+00> : vector<16x32xf32>
    %34 = tpu.matmul %33, %4, %cst_11 {dimension_numbers = #tpu.dot_dimension_numbers<[1], [0], [0], [1], [0, 0, 1, 1], [], []>} : vector<16x32xf32>, vector<32x32xf32>, vector<16x32xf32> -> vector<16x32xf32>
    %35 = vector.broadcast %3 : vector<1x32xf32> to vector<16x32xf32>
    %36 = arith.addf %34, %35 : vector<16x32xf32>
    %c0_12 = arith.constant 0 : index
    %c0_13 = arith.constant 0 : index
    %37 = vector.load %arg2[%c0_12, %c0_13] : memref<16x32xf32, #tpu.memory_space<vmem>>, vector<16x32xf32>
    tpu.vector_store %arg2[%c0_12, %c0_13], %36 {strides = array<i32>} : memref<16x32xf32, #tpu.memory_space<vmem>>, vector<16x32xf32>,
    return
  }
}

</mosaic_0001>

<llo_original>
// kernel: multi_head_attention.1
$region0: #{multi_head_attention.1}
  #allocation0 [shape = 'u32[]', space=smem, size = 0x4, offset = 0x4, fixed_abs, tag = 'smem constant byte address 0x4 - core index']
  #allocation1 [shape = 'u32[144,128]{1,0:T(1,128)}', space=vmem, size = 0x12000, scoped, tag = 'internal scratch']
  %s0 = inlined_call_operand.hbm [shape: f32[16,32], index: 0, kind: input, shape index: {}]
  %s1 = inlined_call_operand.hbm [shape: f32[88,96], index: 1, kind: input, shape index: {}]
  %s2 = inlined_call_operand.hbm [shape: f32[16,32], index: 2, kind: output, shape index: {}]
  %s3 = sld [smem:[#allocation0]]
  $region26: #{multi_head_attention.1} parent=0
    _
  %s5 = ssub.s32 1, %s3
  %s6 = scalar_select 0, %s5, %s3
  $region1: #{multi_head_attention.1} parent=0
    #allocation2 [shape = 'u8[8192]{0}', space=vmem, size = 0x2000, scoped, tag = 'input window, operand 0, single buffered']
    #allocation3 [shape = 's32[1]{0}', space=sflag, size = 0x4, scoped, tag = 'scoped memory for multi_head_attention.1']
    #allocation4 [shape = 's32[1]{0}', space=sflag, size = 0x4, scoped, tag = 'scoped memory for multi_head_attention.1']
    #allocation5 [shape = 'u8[45056]{0}', space=vmem, size = 0xb000, scoped, tag = 'input window, operand 1, single buffered']
    #allocation6 [shape = 's32[1]{0}', space=sflag, size = 0x4, scoped, tag = 'scoped memory for multi_head_attention.1']
    #allocation7 [shape = 'u8[8192]{0}', space=vmem, size = 0x2000, scoped, tag = 'output window, operand 0, single buffered']
    %7 = vsyncpa [#allocation3], 0
    %8 = vsyncpa [#allocation6], 0
    %9 = vsyncpa [#allocation4], 0
    // Predicated region
    $region2: #{multi_head_attention.1} parent=1 // pred_check
      _
    $region3: #{multi_head_attention.1} parent=1 // pred_check_branch
      %11 = sbr.rel (0) target = $region5
    $region4: #{multi_head_attention.1} parent=1 // pred_region
      %s13 = ssub.s32 256, 256
      %14 = vsyncadd [#allocation3], %s13
      %s15 = sshll.u32 [#allocation2], 4
      %s16 = int_to_ptr.vmem [resolvable:$true] %s15
      %21 = dma.hbm_to_vmem [thread:$0]  %s0, 256, %s16, [#allocation3], 128, 128, 8
    $region5: #{multi_head_attention.1} parent=1 // pred_fallthru
      _
    // Predicated region
    $region6: #{multi_head_attention.1} parent=1 // pred_check
      _
    $region7: #{multi_head_attention.1} parent=1 // pred_check_branch
      %23 = sbr.rel (0) target = $region9
    $region8: #{multi_head_attention.1} parent=1 // pred_region
      %s25 = ssub.s32 1408, 1408
      %26 = vsyncadd [#allocation6], %s25
      %s27 = sshll.u32 [#allocation5], 4
      %s28 = int_to_ptr.vmem [resolvable:$true] %s27
      %33 = dma.hbm_to_vmem [thread:$0]  %s1, 1408, %s28, [#allocation6], 128, 128, 8
    $region9: #{multi_head_attention.1} parent=1 // pred_fallthru
      _
    // Predicated region
    $region10: #{multi_head_attention.1} parent=1 // pred_check
      _
    $region11: #{multi_head_attention.1} parent=1 // pred_check_branch
      %35 = sbr.rel (0) target = $region13
    $region12: #{multi_head_attention.1} parent=1 // pred_region
      %36 = dma.done [#allocation3], 256
    $region13: #{multi_head_attention.1} parent=1 // pred_fallthru
      _
    // Predicated region
    $region14: #{multi_head_attention.1} parent=1 // pred_check
      _
    $region15: #{multi_head_attention.1} parent=1 // pred_check_branch
      %38 = sbr.rel (0) target = $region17
    $region16: #{multi_head_attention.1} parent=1 // pred_region
      %39 = dma.done [#allocation6], 1408
    $region17: #{multi_head_attention.1} parent=1 // pred_fallthru
      _
    %v40 = vld [vmem:[#allocation2] sm:$0xff]
    %v41 = vld [vmem:[#allocation2 + $0x8] sm:$0xff]
    %v42 = vld [vmem:[#allocation5] sm:$0xff]
    %v43 = vld [vmem:[#allocation5 + $0x8] sm:$0xff]
    %v44 = vld [vmem:[#allocation5 + $0x10] sm:$0xff]
    %v45 = vld [vmem:[#allocation5 + $0x18] sm:$0xff]
    %v46 = vld [vmem:[#allocation5 + $0x20] sm:$0x1]
    %v47 = vld [vmem:[#allocation5 + $0x21] sm:$0x1]
    %v48 = vld [vmem:[#allocation5 + $0x28] sm:$0xff]
    %v49 = vld [vmem:[#allocation5 + $0x30] sm:$0xff]
    %v50 = vld [vmem:[#allocation5 + $0x38] sm:$0xff]
    %v51 = vld [vmem:[#allocation5 + $0x40] sm:$0xff]
    %v52 = vld [vmem:[#allocation5 + $0x48] sm:$0xff]
    %v53 = vld [vmem:[#allocation5 + $0x50] sm:$0xff]
    %v54 = vlaneseq
    %v55 = vshrl.u32 %v54, 7
    %v56 = vsub.s32 0, %v55
    %v57 = vrot.slane %v46, %v56
    %vm58 = vcmask 261120
    %v60 = vsel %vm58, %v40, 0
    %v63 = vsel %vm58, %v41, 0
    %65 = vmatprep.subr.mxu0 0.0
    %66 = vmatpush1.msra.mxu0 0.0
    %67 = vmatprep.subr.mxu0 0.0
    %68 = vmatpush1.msra.mxu0 0.0
    %69 = vmatprep.subr.mxu0 0.0
    %70 = vmatpush1.msra.mxu0 0.0
    %71 = vmatprep.subr.mxu0 0.0
    %72 = vmatpush1.msra.mxu0 0.0
    %73 = vmatprep.subr.mxu0 0.0
    %74 = vmatpush1.msra.mxu0 0.0
    %75 = vmatprep.subr.mxu0 0.0
    %76 = vmatpush1.msra.mxu0 0.0
    %77 = vmatprep.subr.mxu0 0.0
    %78 = vmatpush1.msra.mxu0 0.0
    %79 = vmatprep.subr.mxu0 0.0
    %80 = vmatpush1.msra.mxu0 0.0
    %81 = vmatprep.subr.mxu0 0.0
    %82 = vmatpush1.msra.mxu0 0.0
    %83 = vmatprep.subr.mxu0 0.0
    %84 = vmatpush1.msra.mxu0 0.0
    %85 = vmatprep.subr.mxu0 0.0
    %86 = vmatpush1.msra.mxu0 0.0
    %87 = vmatprep.subr.mxu0 0.0
    %88 = vmatpush1.msra.mxu0 0.0
    %89 = vmatprep.subr.mxu0 0.0
    %90 = vmatpush1.msra.mxu0 %v45
    %91 = vmatprep.subr.mxu0 0.0
    %92 = vmatpush1.msra.mxu0 %v44
    %93 = vmatprep.subr.mxu0 0.0
    %94 = vmatpush1.msra.mxu0 %v43
    %95 = vmatprep.subr.mxu0 0.0
    %96 = vmatpush1.msra.mxu0 %v42
    %97 = vmatprep.subr.mxu0 0.0
    %98 = vmatpush2.msra.mxu0 0.0
    %99 = vmatprep.subr.mxu0 0.0
    %100 = vmatpush2.msra.mxu0 0.0
    %101 = vmatprep.subr.mxu0 0.0
    %102 = vmatpush2.msra.mxu0 0.0
    %103 = vmatprep.subr.mxu0 0.0
    %104 = vmatpush2.msra.mxu0 0.0
    %105 = vmatprep.subr.mxu0 0.0
    %106 = vmatpush2.msra.mxu0 0.0
    %107 = vmatprep.subr.mxu0 0.0
    %108 = vmatpush2.msra.mxu0 0.0
    %109 = vmatprep.subr.mxu0 0.0
    %110 = vmatpush2.msra.mxu0 0.0
    %111 = vmatprep.subr.mxu0 0.0
    %112 = vmatpush2.msra.mxu0 0.0
    %113 = vmatprep.subr.mxu0 0.0
    %114 = vmatpush2.msra.mxu0 0.0
    %115 = vmatprep.subr.mxu0 0.0
    %116 = vmatpush2.msra.mxu0 0.0
    %117 = vmatprep.subr.mxu0 0.0
    %118 = vmatpush2.msra.mxu0 0.0
    %119 = vmatprep.subr.mxu0 0.0
    %120 = vmatpush2.msra.mxu0 0.0
    %121 = vmatprep.subr.mxu0 0.0
    %122 = vmatpush2.msra.mxu0 0.0
    %123 = vmatprep.subr.mxu0 0.0
    %124 = vmatpush2.msra.mxu0 0.0
    %125 = vmatprep.subr.mxu0 0.0
    %126 = vmatpush2.msra.mxu0 0.0
    %127 = vmatprep.subr.mxu0 0.0
    %128 = vmatpush2.msra.mxu0 0.0
    %129 = vmatprep.mubr.f32.mxu0 0.0
    %130 = vmatmul.mubr.f32.gmra.mxu0 %v60
    %v131 = vpop.f32.mrf.mxu0
    %v132 = vadd.f32 %v57, %v131
    %v133 = vpop.f32.mrf.mxu0
    %134 = vmatprep.mubr.f32.mxu0 0.0
    %135 = vmatmul.mubr.f32.gmra.mxu0 %v63
    %v136 = vpop.f32.mrf.mxu0
    %v137 = vadd.f32 %v57, %v136
    %v138 = vpop.f32.mrf.mxu0
    %139 = vdwg.mxu0
    %142 = vrot.lane.b32.xlu0 %v132, 120
    %v143 = vpop.permute.xlu0 %142
    %144 = vrot.lane.b32.xlu0 %v137, 120
    %v145 = vpop.permute.xlu0 %144
    %148 = vrot.lane.b32.xlu0 %v132, 112
    %v149 = vpop.permute.xlu0 %148
    %150 = vrot.lane.b32.xlu0 %v137, 112
    %v151 = vpop.permute.xlu0 %150
    %154 = vrot.lane.b32.xlu0 %v132, 104
    %v155 = vpop.permute.xlu0 %154
    %156 = vrot.lane.b32.xlu0 %v137, 104
    %v157 = vpop.permute.xlu0 %156
    %v160 = vcombine.low %v132, %v149
    %v161 = vcombine.high %v132, %v149
    %v163 = vunpack.c.l.s4 1983009808
    %v164 = vunpack.c.0.s8 %v163
    %v165 = vlaneseq
    %v166 = vshrl.u32 %v165, 7
    %v167 = vsub.s32 %v164, %v166
    %v168 = vrot.slane %v160, %v167
    %v170 = vunpack.c.l.s4 1983009808
    %v171 = vunpack.c.0.s8 %v170
    %v172 = vlaneseq
    %v173 = vshrl.u32 %v172, 7
    %v174 = vsub.s32 %v171, %v173
    %v175 = vrot.slane %v161, %v174
    %v176 = vcombine.low %v143, %v155
    %v177 = vcombine.high %v143, %v155
    %v179 = vunpack.c.l.s4 1983009808
    %v180 = vunpack.c.0.s8 %v179
    %v181 = vlaneseq
    %v182 = vshrl.u32 %v181, 7
    %v183 = vsub.s32 %v180, %v182
    %v184 = vrot.slane %v176, %v183
    %v186 = vunpack.c.l.s4 1983009808
    %v187 = vunpack.c.0.s8 %v186
    %v188 = vlaneseq
    %v189 = vshrl.u32 %v188, 7
    %v190 = vsub.s32 %v187, %v189
    %v191 = vrot.slane %v177, %v190
    %v192 = vcombine.low %v168, %v184
    %v193 = vcombine.high %v168, %v184
    %v195 = vunpack.c.l.s4 1934713408
    %v196 = vunpack.c.0.s8 %v195
    %v197 = vlaneseq
    %v198 = vshrl.u32 %v197, 7
    %v199 = vsub.s32 %v196, %v198
    %v200 = vrot.slane %v192, %v199
    %v202 = vunpack.c.l.s4 1934713408
    %v203 = vunpack.c.0.s8 %v202
    %v204 = vlaneseq
    %v205 = vshrl.u32 %v204, 7
    %v206 = vsub.s32 %v203, %v205
    %v207 = vrot.slane %v193, %v206
    %v208 = vcombine.low %v175, %v191
    %v209 = vcombine.high %v175, %v191
    %v211 = vunpack.c.l.s4 1934713408
    %v212 = vunpack.c.0.s8 %v211
    %v213 = vlaneseq
    %v214 = vshrl.u32 %v213, 7
    %v215 = vsub.s32 %v212, %v214
    %v216 = vrot.slane %v208, %v215
    %v218 = vunpack.c.l.s4 1934713408
    %v219 = vunpack.c.0.s8 %v218
    %v220 = vlaneseq
    %v221 = vshrl.u32 %v220, 7
    %v222 = vsub.s32 %v219, %v221
    %v223 = vrot.slane %v209, %v222
    %v224 = vcombine.high %v200, 0.0
    %v225 = vcombine.high %v207, 0.0
    %v226 = vcombine.high %v216, 0.0
    %v227 = vcombine.high %v223, 0.0
    %v228 = vcombine.low %v137, %v151
    %v229 = vcombine.high %v137, %v151
    %v231 = vunpack.c.l.s4 1983009808
    %v232 = vunpack.c.0.s8 %v231
    %v233 = vlaneseq
    %v234 = vshrl.u32 %v233, 7
    %v235 = vsub.s32 %v232, %v234
    %v236 = vrot.slane %v228, %v235
    %v238 = vunpack.c.l.s4 1983009808
    %v239 = vunpack.c.0.s8 %v238
    %v240 = vlaneseq
    %v241 = vshrl.u32 %v240, 7
    %v242 = vsub.s32 %v239, %v241
    %v243 = vrot.slane %v229, %v242
    %v244 = vcombine.low %v145, %v157
    %v245 = vcombine.high %v145, %v157
    %v247 = vunpack.c.l.s4 1983009808
    %v248 = vunpack.c.0.s8 %v247
    %v249 = vlaneseq
    %v250 = vshrl.u32 %v249, 7
    %v251 = vsub.s32 %v248, %v250
    %v252 = vrot.slane %v244, %v251
    %v254 = vunpack.c.l.s4 1983009808
    %v255 = vunpack.c.0.s8 %v254
    %v256 = vlaneseq
    %v257 = vshrl.u32 %v256, 7
    %v258 = vsub.s32 %v255, %v257
    %v259 = vrot.slane %v245, %v258
    %v260 = vcombine.low %v236, %v252
    %v261 = vcombine.high %v236, %v252
    %v263 = vunpack.c.l.s4 1934713408
    %v264 = vunpack.c.0.s8 %v263
    %v265 = vlaneseq
    %v266 = vshrl.u32 %v265, 7
    %v267 = vsub.s32 %v264, %v266
    %v268 = vrot.slane %v260, %v267
    %v270 = vunpack.c.l.s4 1934713408
    %v271 = vunpack.c.0.s8 %v270
    %v272 = vlaneseq
    %v273 = vshrl.u32 %v272, 7
    %v274 = vsub.s32 %v271, %v273
    %v275 = vrot.slane %v261, %v274
    %v276 = vcombine.low %v243, %v259
    %v277 = vcombine.high %v243, %v259
    %v279 = vunpack.c.l.s4 1934713408
    %v280 = vunpack.c.0.s8 %v279
    %v281 = vlaneseq
    %v282 = vshrl.u32 %v281, 7
    %v283 = vsub.s32 %v280, %v282
    %v284 = vrot.slane %v276, %v283
    %v286 = vunpack.c.l.s4 1934713408
    %v287 = vunpack.c.0.s8 %v286
    %v288 = vlaneseq
    %v289 = vshrl.u32 %v288, 7
    %v290 = vsub.s32 %v287, %v289
    %v291 = vrot.slane %v277, %v290
    %v292 = vcombine.high %v268, 0.0
    %v293 = vcombine.high %v275, 0.0
    %v294 = vcombine.high %v284, 0.0
    %v295 = vcombine.high %v291, 0.0
    %v296 = vcombine.low %v200, %v207
    %v298 = vunpack.c.l.s4 1983009808
    %v299 = vunpack.c.0.s8 %v298
    %v300 = vlaneseq
    %v301 = vshrl.u32 %v300, 7
    %v302 = vsub.s32 %v299, %v301
    %v303 = vrot.slane %v296, %v302
    %v304 = vcombine.low %v224, %v225
    %v306 = vunpack.c.l.s4 1983009808
    %v307 = vunpack.c.0.s8 %v306
    %v308 = vlaneseq
    %v309 = vshrl.u32 %v308, 7
    %v310 = vsub.s32 %v307, %v309
    %v311 = vrot.slane %v304, %v310
    %v312 = vcombine.low %v216, %v223
    %v314 = vunpack.c.l.s4 1983009808
    %v315 = vunpack.c.0.s8 %v314
    %v316 = vlaneseq
    %v317 = vshrl.u32 %v316, 7
    %v318 = vsub.s32 %v315, %v317
    %v319 = vrot.slane %v312, %v318
    %v320 = vcombine.low %v226, %v227
    %v322 = vunpack.c.l.s4 1983009808
    %v323 = vunpack.c.0.s8 %v322
    %v324 = vlaneseq
    %v325 = vshrl.u32 %v324, 7
    %v326 = vsub.s32 %v323, %v325
    %v327 = vrot.slane %v320, %v326
    %v328 = vcombine.low %v303, %v311
    %v329 = vcombine.high %v303, %v311
    %v331 = vunpack.c.l.s4 1934713408
    %v332 = vunpack.c.0.s8 %v331
    %v333 = vlaneseq
    %v334 = vshrl.u32 %v333, 7
    %v335 = vsub.s32 %v332, %v334
    %v336 = vrot.slane %v328, %v335
    %v338 = vunpack.c.l.s4 1934713408
    %v339 = vunpack.c.0.s8 %v338
    %v340 = vlaneseq
    %v341 = vshrl.u32 %v340, 7
    %v342 = vsub.s32 %v339, %v341
    %v343 = vrot.slane %v329, %v342
    %v344 = vcombine.low %v319, %v327
    %v345 = vcombine.high %v319, %v327
    %v347 = vunpack.c.l.s4 1934713408
    %v348 = vunpack.c.0.s8 %v347
    %v349 = vlaneseq
    %v350 = vshrl.u32 %v349, 7
    %v351 = vsub.s32 %v348, %v350
    %v352 = vrot.slane %v344, %v351
    %v354 = vunpack.c.l.s4 1934713408
    %v355 = vunpack.c.0.s8 %v354
    %v356 = vlaneseq
    %v357 = vshrl.u32 %v356, 7
    %v358 = vsub.s32 %v355, %v357
    %v359 = vrot.slane %v345, %v358
    %v360 = vcombine.low %v336, %v352
    %v361 = vcombine.high %v336, %v352
    %v362 = vcombine.low %v343, %v359
    %v363 = vcombine.high %v343, %v359
    %v364 = vcombine.low %v268, %v275
    %v366 = vunpack.c.l.s4 1983009808
    %v367 = vunpack.c.0.s8 %v366
    %v368 = vlaneseq
    %v369 = vshrl.u32 %v368, 7
    %v370 = vsub.s32 %v367, %v369
    %v371 = vrot.slane %v364, %v370
    %v372 = vcombine.low %v292, %v293
    %v374 = vunpack.c.l.s4 1983009808
    %v375 = vunpack.c.0.s8 %v374
    %v376 = vlaneseq
    %v377 = vshrl.u32 %v376, 7
    %v378 = vsub.s32 %v375, %v377
    %v379 = vrot.slane %v372, %v378
    %v380 = vcombine.low %v284, %v291
    %v382 = vunpack.c.l.s4 1983009808
    %v383 = vunpack.c.0.s8 %v382
    %v384 = vlaneseq
    %v385 = vshrl.u32 %v384, 7
    %v386 = vsub.s32 %v383, %v385
    %v387 = vrot.slane %v380, %v386
    %v388 = vcombine.low %v294, %v295
    %v390 = vunpack.c.l.s4 1983009808
    %v391 = vunpack.c.0.s8 %v390
    %v392 = vlaneseq
    %v393 = vshrl.u32 %v392, 7
    %v394 = vsub.s32 %v391, %v393
    %v395 = vrot.slane %v388, %v394
    %v396 = vcombine.low %v371, %v379
    %v397 = vcombine.high %v371, %v379
    %v399 = vunpack.c.l.s4 1934713408
    %v400 = vunpack.c.0.s8 %v399
    %v401 = vlaneseq
    %v402 = vshrl.u32 %v401, 7
    %v403 = vsub.s32 %v400, %v402
    %v404 = vrot.slane %v396, %v403
    %v406 = vunpack.c.l.s4 1934713408
    %v407 = vunpack.c.0.s8 %v406
    %v408 = vlaneseq
    %v409 = vshrl.u32 %v408, 7
    %v410 = vsub.s32 %v407, %v409
    %v411 = vrot.slane %v397, %v410
    %v412 = vcombine.low %v387, %v395
    %v413 = vcombine.high %v387, %v395
    %v415 = vunpack.c.l.s4 1934713408
    %v416 = vunpack.c.0.s8 %v415
    %v417 = vlaneseq
    %v418 = vshrl.u32 %v417, 7
    %v419 = vsub.s32 %v416, %v418
    %v420 = vrot.slane %v412, %v419
    %v422 = vunpack.c.l.s4 1934713408
    %v423 = vunpack.c.0.s8 %v422
    %v424 = vlaneseq
    %v425 = vshrl.u32 %v424, 7
    %v426 = vsub.s32 %v423, %v425
    %v427 = vrot.slane %v413, %v426
    %v428 = vcombine.low %v404, %v420
    %v429 = vcombine.high %v404, %v420
    %v430 = vcombine.low %v411, %v427
    %v431 = vcombine.high %v411, %v427
    %432 = vrot.lane.b32.xlu0 %v132, 96
    %v433 = vpop.permute.xlu0 %432
    %434 = vrot.lane.b32.xlu0 %v137, 96
    %v435 = vpop.permute.xlu0 %434
    %436 = vrot.lane.b32.xlu0 %v143, 96
    %v437 = vpop.permute.xlu0 %436
    %438 = vrot.lane.b32.xlu0 %v145, 96
    %v439 = vpop.permute.xlu0 %438
    %440 = vrot.lane.b32.xlu0 %v149, 96
    %v441 = vpop.permute.xlu0 %440
    %442 = vrot.lane.b32.xlu0 %v151, 96
    %v443 = vpop.permute.xlu0 %442
    %444 = vrot.lane.b32.xlu0 %v155, 96
    %v445 = vpop.permute.xlu0 %444
    %446 = vrot.lane.b32.xlu0 %v157, 96
    %v447 = vpop.permute.xlu0 %446
    %v456 = vcombine.low %v433, %v441
    %v457 = vcombine.high %v433, %v441
    %v459 = vunpack.c.l.s4 1983009808
    %v460 = vunpack.c.0.s8 %v459
    %v461 = vlaneseq
    %v462 = vshrl.u32 %v461, 7
    %v463 = vsub.s32 %v460, %v462
    %v464 = vrot.slane %v456, %v463
    %v466 = vunpack.c.l.s4 1983009808
    %v467 = vunpack.c.0.s8 %v466
    %v468 = vlaneseq
    %v469 = vshrl.u32 %v468, 7
    %v470 = vsub.s32 %v467, %v469
    %v471 = vrot.slane %v457, %v470
    %v472 = vcombine.low %v437, %v445
    %v473 = vcombine.high %v437, %v445
    %v475 = vunpack.c.l.s4 1983009808
    %v476 = vunpack.c.0.s8 %v475
    %v477 = vlaneseq
    %v478 = vshrl.u32 %v477, 7
    %v479 = vsub.s32 %v476, %v478
    %v480 = vrot.slane %v472, %v479
    %v482 = vunpack.c.l.s4 1983009808
    %v483 = vunpack.c.0.s8 %v482
    %v484 = vlaneseq
    %v485 = vshrl.u32 %v484, 7
    %v486 = vsub.s32 %v483, %v485
    %v487 = vrot.slane %v473, %v486
    %v488 = vcombine.low %v464, %v480
    %v489 = vcombine.high %v464, %v480
    %v491 = vunpack.c.l.s4 1934713408
    %v492 = vunpack.c.0.s8 %v491
    %v493 = vlaneseq
    %v494 = vshrl.u32 %v493, 7
    %v495 = vsub.s32 %v492, %v494
    %v496 = vrot.slane %v488, %v495
    %v498 = vunpack.c.l.s4 1934713408
    %v499 = vunpack.c.0.s8 %v498
    %v500 = vlaneseq
    %v501 = vshrl.u32 %v500, 7
    %v502 = vsub.s32 %v499, %v501
    %v503 = vrot.slane %v489, %v502
    %v504 = vcombine.low %v471, %v487
    %v505 = vcombine.high %v471, %v487
    %v507 = vunpack.c.l.s4 1934713408
    %v508 = vunpack.c.0.s8 %v507
    %v509 = vlaneseq
    %v510 = vshrl.u32 %v509, 7
    %v511 = vsub.s32 %v508, %v510
    %v512 = vrot.slane %v504, %v511
    %v514 = vunpack.c.l.s4 1934713408
    %v515 = vunpack.c.0.s8 %v514
    %v516 = vlaneseq
    %v517 = vshrl.u32 %v516, 7
    %v518 = vsub.s32 %v515, %v517
    %v519 = vrot.slane %v505, %v518
    %v520 = vcombine.high %v496, 0.0
    %v521 = vcombine.high %v503, 0.0
    %v522 = vcombine.high %v512, 0.0
    %v523 = vcombine.high %v519, 0.0
    %v524 = vcombine.low %v435, %v443
    %v525 = vcombine.high %v435, %v443
    %v527 = vunpack.c.l.s4 1983009808
    %v528 = vunpack.c.0.s8 %v527
    %v529 = vlaneseq
    %v530 = vshrl.u32 %v529, 7
    %v531 = vsub.s32 %v528, %v530
    %v532 = vrot.slane %v524, %v531
    %v534 = vunpack.c.l.s4 1983009808
    %v535 = vunpack.c.0.s8 %v534
    %v536 = vlaneseq
    %v537 = vshrl.u32 %v536, 7
    %v538 = vsub.s32 %v535, %v537
    %v539 = vrot.slane %v525, %v538
    %v540 = vcombine.low %v439, %v447
    %v541 = vcombine.high %v439, %v447
    %v543 = vunpack.c.l.s4 1983009808
    %v544 = vunpack.c.0.s8 %v543
    %v545 = vlaneseq
    %v546 = vshrl.u32 %v545, 7
    %v547 = vsub.s32 %v544, %v546
    %v548 = vrot.slane %v540, %v547
    %v550 = vunpack.c.l.s4 1983009808
    %v551 = vunpack.c.0.s8 %v550
    %v552 = vlaneseq
    %v553 = vshrl.u32 %v552, 7
    %v554 = vsub.s32 %v551, %v553
    %v555 = vrot.slane %v541, %v554
    %v556 = vcombine.low %v532, %v548
    %v557 = vcombine.high %v532, %v548
    %v559 = vunpack.c.l.s4 1934713408
    %v560 = vunpack.c.0.s8 %v559
    %v561 = vlaneseq
    %v562 = vshrl.u32 %v561, 7
    %v563 = vsub.s32 %v560, %v562
    %v564 = vrot.slane %v556, %v563
    %v566 = vunpack.c.l.s4 1934713408
    %v567 = vunpack.c.0.s8 %v566
    %v568 = vlaneseq
    %v569 = vshrl.u32 %v568, 7
    %v570 = vsub.s32 %v567, %v569
    %v571 = vrot.slane %v557, %v570
    %v572 = vcombine.low %v539, %v555
    %v573 = vcombine.high %v539, %v555
    %v575 = vunpack.c.l.s4 1934713408
    %v576 = vunpack.c.0.s8 %v575
    %v577 = vlaneseq
    %v578 = vshrl.u32 %v577, 7
    %v579 = vsub.s32 %v576, %v578
    %v580 = vrot.slane %v572, %v579
    %v582 = vunpack.c.l.s4 1934713408
    %v583 = vunpack.c.0.s8 %v582
    %v584 = vlaneseq
    %v585 = vshrl.u32 %v584, 7
    %v586 = vsub.s32 %v583, %v585
    %v587 = vrot.slane %v573, %v586
    %v588 = vcombine.high %v564, 0.0
    %v589 = vcombine.high %v571, 0.0
    %v590 = vcombine.high %v580, 0.0
    %v591 = vcombine.high %v587, 0.0
    %v592 = vcombine.low %v496, %v503
    %v594 = vunpack.c.l.s4 1983009808
    %v595 = vunpack.c.0.s8 %v594
    %v596 = vlaneseq
    %v597 = vshrl.u32 %v596, 7
    %v598 = vsub.s32 %v595, %v597
    %v599 = vrot.slane %v592, %v598
    %v600 = vcombine.low %v520, %v521
    %v602 = vunpack.c.l.s4 1983009808
    %v603 = vunpack.c.0.s8 %v602
    %v604 = vlaneseq
    %v605 = vshrl.u32 %v604, 7
    %v606 = vsub.s32 %v603, %v605
    %v607 = vrot.slane %v600, %v606
    %v608 = vcombine.low %v512, %v519
    %v610 = vunpack.c.l.s4 1983009808
    %v611 = vunpack.c.0.s8 %v610
    %v612 = vlaneseq
    %v613 = vshrl.u32 %v612, 7
    %v614 = vsub.s32 %v611, %v613
    %v615 = vrot.slane %v608, %v614
    %v616 = vcombine.low %v522, %v523
    %v618 = vunpack.c.l.s4 1983009808
    %v619 = vunpack.c.0.s8 %v618
    %v620 = vlaneseq
    %v621 = vshrl.u32 %v620, 7
    %v622 = vsub.s32 %v619, %v621
    %v623 = vrot.slane %v616, %v622
    %v624 = vcombine.low %v599, %v607
    %v625 = vcombine.high %v599, %v607
    %v627 = vunpack.c.l.s4 1934713408
    %v628 = vunpack.c.0.s8 %v627
    %v629 = vlaneseq
    %v630 = vshrl.u32 %v629, 7
    %v631 = vsub.s32 %v628, %v630
    %v632 = vrot.slane %v624, %v631
    %v634 = vunpack.c.l.s4 1934713408
    %v635 = vunpack.c.0.s8 %v634
    %v636 = vlaneseq
    %v637 = vshrl.u32 %v636, 7
    %v638 = vsub.s32 %v635, %v637
    %v639 = vrot.slane %v625, %v638
    %v640 = vcombine.low %v615, %v623
    %v641 = vcombine.high %v615, %v623
    %v643 = vunpack.c.l.s4 1934713408
    %v644 = vunpack.c.0.s8 %v643
    %v645 = vlaneseq
    %v646 = vshrl.u32 %v645, 7
    %v647 = vsub.s32 %v644, %v646
    %v648 = vrot.slane %v640, %v647
    %v650 = vunpack.c.l.s4 1934713408
    %v651 = vunpack.c.0.s8 %v650
    %v652 = vlaneseq
    %v653 = vshrl.u32 %v652, 7
    %v654 = vsub.s32 %v651, %v653
    %v655 = vrot.slane %v641, %v654
    %v656 = vcombine.low %v632, %v648
    %v657 = vcombine.high %v632, %v648
    %v658 = vcombine.low %v639, %v655
    %v659 = vcombine.high %v639, %v655
    %v660 = vcombine.low %v564, %v571
    %v662 = vunpack.c.l.s4 1983009808
    %v663 = vunpack.c.0.s8 %v662
    %v664 = vlaneseq
    %v665 = vshrl.u32 %v664, 7
    %v666 = vsub.s32 %v663, %v665
    %v667 = vrot.slane %v660, %v666
    %v668 = vcombine.low %v588, %v589
    %v670 = vunpack.c.l.s4 1983009808
    %v671 = vunpack.c.0.s8 %v670
    %v672 = vlaneseq
    %v673 = vshrl.u32 %v672, 7
    %v674 = vsub.s32 %v671, %v673
    %v675 = vrot.slane %v668, %v674
    %v676 = vcombine.low %v580, %v587
    %v678 = vunpack.c.l.s4 1983009808
    %v679 = vunpack.c.0.s8 %v678
    %v680 = vlaneseq
    %v681 = vshrl.u32 %v680, 7
    %v682 = vsub.s32 %v679, %v681
    %v683 = vrot.slane %v676, %v682
    %v684 = vcombine.low %v590, %v591
    %v686 = vunpack.c.l.s4 1983009808
    %v687 = vunpack.c.0.s8 %v686
    %v688 = vlaneseq
    %v689 = vshrl.u32 %v688, 7
    %v690 = vsub.s32 %v687, %v689
    %v691 = vrot.slane %v684, %v690
    %v692 = vcombine.low %v667, %v675
    %v693 = vcombine.high %v667, %v675
    %v695 = vunpack.c.l.s4 1934713408
    %v696 = vunpack.c.0.s8 %v695
    %v697 = vlaneseq
    %v698 = vshrl.u32 %v697, 7
    %v699 = vsub.s32 %v696, %v698
    %v700 = vrot.slane %v692, %v699
    %v702 = vunpack.c.l.s4 1934713408
    %v703 = vunpack.c.0.s8 %v702
    %v704 = vlaneseq
    %v705 = vshrl.u32 %v704, 7
    %v706 = vsub.s32 %v703, %v705
    %v707 = vrot.slane %v693, %v706
    %v708 = vcombine.low %v683, %v691
    %v709 = vcombine.high %v683, %v691
    %v711 = vunpack.c.l.s4 1934713408
    %v712 = vunpack.c.0.s8 %v711
    %v713 = vlaneseq
    %v714 = vshrl.u32 %v713, 7
    %v715 = vsub.s32 %v712, %v714
    %v716 = vrot.slane %v708, %v715
    %v718 = vunpack.c.l.s4 1934713408
    %v719 = vunpack.c.0.s8 %v718
    %v720 = vlaneseq
    %v721 = vshrl.u32 %v720, 7
    %v722 = vsub.s32 %v719, %v721
    %v723 = vrot.slane %v709, %v722
    %v724 = vcombine.low %v700, %v716
    %v725 = vcombine.high %v700, %v716
    %v726 = vcombine.low %v707, %v723
    %v727 = vcombine.high %v707, %v723
    %728 = vrot.lane.b32.xlu0 %v132, 64
    %v729 = vpop.permute.xlu0 %728
    %730 = vrot.lane.b32.xlu0 %v137, 64
    %v731 = vpop.permute.xlu0 %730
    %732 = vrot.lane.b32.xlu0 %v143, 64
    %v733 = vpop.permute.xlu0 %732
    %734 = vrot.lane.b32.xlu0 %v145, 64
    %v735 = vpop.permute.xlu0 %734
    %736 = vrot.lane.b32.xlu0 %v149, 64
    %v737 = vpop.permute.xlu0 %736
    %738 = vrot.lane.b32.xlu0 %v151, 64
    %v739 = vpop.permute.xlu0 %738
    %740 = vrot.lane.b32.xlu0 %v155, 64
    %v741 = vpop.permute.xlu0 %740
    %742 = vrot.lane.b32.xlu0 %v157, 64
    %v743 = vpop.permute.xlu0 %742
    %v752 = vcombine.low %v729, %v737
    %v753 = vcombine.high %v729, %v737
    %v755 = vunpack.c.l.s4 1983009808
    %v756 = vunpack.c.0.s8 %v755
    %v757 = vlaneseq
    %v758 = vshrl.u32 %v757, 7
    %v759 = vsub.s32 %v756, %v758
    %v760 = vrot.slane %v752, %v759
    %v762 = vunpack.c.l.s4 1983009808
    %v763 = vunpack.c.0.s8 %v762
    %v764 = vlaneseq
    %v765 = vshrl.u32 %v764, 7
    %v766 = vsub.s32 %v763, %v765
    %v767 = vrot.slane %v753, %v766
    %v768 = vcombine.low %v733, %v741
    %v769 = vcombine.high %v733, %v741
    %v771 = vunpack.c.l.s4 1983009808
    %v772 = vunpack.c.0.s8 %v771
    %v773 = vlaneseq
    %v774 = vshrl.u32 %v773, 7
    %v775 = vsub.s32 %v772, %v774
    %v776 = vrot.slane %v768, %v775
    %v778 = vunpack.c.l.s4 1983009808
    %v779 = vunpack.c.0.s8 %v778
    %v780 = vlaneseq
    %v781 = vshrl.u32 %v780, 7
    %v782 = vsub.s32 %v779, %v781
    %v783 = vrot.slane %v769, %v782
    %v784 = vcombine.low %v760, %v776
    %v785 = vcombine.high %v760, %v776
    %v787 = vunpack.c.l.s4 1934713408
    %v788 = vunpack.c.0.s8 %v787
    %v789 = vlaneseq
    %v790 = vshrl.u32 %v789, 7
    %v791 = vsub.s32 %v788, %v790
    %v792 = vrot.slane %v784, %v791
    %v794 = vunpack.c.l.s4 1934713408
    %v795 = vunpack.c.0.s8 %v794
    %v796 = vlaneseq
    %v797 = vshrl.u32 %v796, 7
    %v798 = vsub.s32 %v795, %v797
    %v799 = vrot.slane %v785, %v798
    %v800 = vcombine.low %v767, %v783
    %v801 = vcombine.high %v767, %v783
    %v803 = vunpack.c.l.s4 1934713408
    %v804 = vunpack.c.0.s8 %v803
    %v805 = vlaneseq
    %v806 = vshrl.u32 %v805, 7
    %v807 = vsub.s32 %v804, %v806
    %v808 = vrot.slane %v800, %v807
    %v810 = vunpack.c.l.s4 1934713408
    %v811 = vunpack.c.0.s8 %v810
    %v812 = vlaneseq
    %v813 = vshrl.u32 %v812, 7
    %v814 = vsub.s32 %v811, %v813
    %v815 = vrot.slane %v801, %v814
    %v816 = vcombine.high %v792, 0.0
    %v817 = vcombine.high %v799, 0.0
    %v818 = vcombine.high %v808, 0.0
    %v819 = vcombine.high %v815, 0.0
    %v820 = vcombine.low %v731, %v739
    %v821 = vcombine.high %v731, %v739
    %v823 = vunpack.c.l.s4 1983009808
    %v824 = vunpack.c.0.s8 %v823
    %v825 = vlaneseq
    %v826 = vshrl.u32 %v825, 7
    %v827 = vsub.s32 %v824, %v826
    %v828 = vrot.slane %v820, %v827
    %v830 = vunpack.c.l.s4 1983009808
    %v831 = vunpack.c.0.s8 %v830
    %v832 = vlaneseq
    %v833 = vshrl.u32 %v832, 7
    %v834 = vsub.s32 %v831, %v833
    %v835 = vrot.slane %v821, %v834
    %v836 = vcombine.low %v735, %v743
    %v837 = vcombine.high %v735, %v743
    %v839 = vunpack.c.l.s4 1983009808
    %v840 = vunpack.c.0.s8 %v839
    %v841 = vlaneseq
    %v842 = vshrl.u32 %v841, 7
    %v843 = vsub.s32 %v840, %v842
    %v844 = vrot.slane %v836, %v843
    %v846 = vunpack.c.l.s4 1983009808
    %v847 = vunpack.c.0.s8 %v846
    %v848 = vlaneseq
    %v849 = vshrl.u32 %v848, 7
    %v850 = vsub.s32 %v847, %v849
    %v851 = vrot.slane %v837, %v850
    %v852 = vcombine.low %v828, %v844
    %v853 = vcombine.high %v828, %v844
    %v855 = vunpack.c.l.s4 1934713408
    %v856 = vunpack.c.0.s8 %v855
    %v857 = vlaneseq
    %v858 = vshrl.u32 %v857, 7
    %v859 = vsub.s32 %v856, %v858
    %v860 = vrot.slane %v852, %v859
    %v862 = vunpack.c.l.s4 1934713408
    %v863 = vunpack.c.0.s8 %v862
    %v864 = vlaneseq
    %v865 = vshrl.u32 %v864, 7
    %v866 = vsub.s32 %v863, %v865
    %v867 = vrot.slane %v853, %v866
    %v868 = vcombine.low %v835, %v851
    %v869 = vcombine.high %v835, %v851
    %v871 = vunpack.c.l.s4 1934713408
    %v872 = vunpack.c.0.s8 %v871
    %v873 = vlaneseq
    %v874 = vshrl.u32 %v873, 7
    %v875 = vsub.s32 %v872, %v874
    %v876 = vrot.slane %v868, %v875
    %v878 = vunpack.c.l.s4 1934713408
    %v879 = vunpack.c.0.s8 %v878
    %v880 = vlaneseq
    %v881 = vshrl.u32 %v880, 7
    %v882 = vsub.s32 %v879, %v881
    %v883 = vrot.slane %v869, %v882
    %v884 = vcombine.high %v860, 0.0
    %v885 = vcombine.high %v867, 0.0
    %v886 = vcombine.high %v876, 0.0
    %v887 = vcombine.high %v883, 0.0
    %v888 = vcombine.low %v792, %v799
    %v890 = vunpack.c.l.s4 1983009808
    %v891 = vunpack.c.0.s8 %v890
    %v892 = vlaneseq
    %v893 = vshrl.u32 %v892, 7
    %v894 = vsub.s32 %v891, %v893
    %v895 = vrot.slane %v888, %v894
    %v896 = vcombine.low %v816, %v817
    %v898 = vunpack.c.l.s4 1983009808
    %v899 = vunpack.c.0.s8 %v898
    %v900 = vlaneseq
    %v901 = vshrl.u32 %v900, 7
    %v902 = vsub.s32 %v899, %v901
    %v903 = vrot.slane %v896, %v902
    %v904 = vcombine.low %v808, %v815
    %v906 = vunpack.c.l.s4 1983009808
    %v907 = vunpack.c.0.s8 %v906
    %v908 = vlaneseq
    %v909 = vshrl.u32 %v908, 7
    %v910 = vsub.s32 %v907, %v909
    %v911 = vrot.slane %v904, %v910
    %v912 = vcombine.low %v818, %v819
    %v914 = vunpack.c.l.s4 1983009808
    %v915 = vunpack.c.0.s8 %v914
    %v916 = vlaneseq
    %v917 = vshrl.u32 %v916, 7
    %v918 = vsub.s32 %v915, %v917
    %v919 = vrot.slane %v912, %v918
    %v920 = vcombine.low %v895, %v903
    %v921 = vcombine.high %v895, %v903
    %v923 = vunpack.c.l.s4 1934713408
    %v924 = vunpack.c.0.s8 %v923
    %v925 = vlaneseq
    %v926 = vshrl.u32 %v925, 7
    %v927 = vsub.s32 %v924, %v926
    %v928 = vrot.slane %v920, %v927
    %v930 = vunpack.c.l.s4 1934713408
    %v931 = vunpack.c.0.s8 %v930
    %v932 = vlaneseq
    %v933 = vshrl.u32 %v932, 7
    %v934 = vsub.s32 %v931, %v933
    %v935 = vrot.slane %v921, %v934
    %v936 = vcombine.low %v911, %v919
    %v937 = vcombine.high %v911, %v919
    %v939 = vunpack.c.l.s4 1934713408
    %v940 = vunpack.c.0.s8 %v939
    %v941 = vlaneseq
    %v942 = vshrl.u32 %v941, 7
    %v943 = vsub.s32 %v940, %v942
    %v944 = vrot.slane %v936, %v943
    %v946 = vunpack.c.l.s4 1934713408
    %v947 = vunpack.c.0.s8 %v946
    %v948 = vlaneseq
    %v949 = vshrl.u32 %v948, 7
    %v950 = vsub.s32 %v947, %v949
    %v951 = vrot.slane %v937, %v950
    %v952 = vcombine.low %v928, %v944
    %v953 = vcombine.high %v928, %v944
    %v954 = vcombine.low %v935, %v951
    %v955 = vcombine.high %v935, %v951
    %v956 = vcombine.low %v860, %v867
    %v958 = vunpack.c.l.s4 1983009808
    %v959 = vunpack.c.0.s8 %v958
    %v960 = vlaneseq
    %v961 = vshrl.u32 %v960, 7
    %v962 = vsub.s32 %v959, %v961
    %v963 = vrot.slane %v956, %v962
    %v964 = vcombine.low %v884, %v885
    %v966 = vunpack.c.l.s4 1983009808
    %v967 = vunpack.c.0.s8 %v966
    %v968 = vlaneseq
    %v969 = vshrl.u32 %v968, 7
    %v970 = vsub.s32 %v967, %v969
    %v971 = vrot.slane %v964, %v970
    %v972 = vcombine.low %v876, %v883
    %v974 = vunpack.c.l.s4 1983009808
    %v975 = vunpack.c.0.s8 %v974
    %v976 = vlaneseq
    %v977 = vshrl.u32 %v976, 7
    %v978 = vsub.s32 %v975, %v977
    %v979 = vrot.slane %v972, %v978
    %v980 = vcombine.low %v886, %v887
    %v982 = vunpack.c.l.s4 1983009808
    %v983 = vunpack.c.0.s8 %v982
    %v984 = vlaneseq
    %v985 = vshrl.u32 %v984, 7
    %v986 = vsub.s32 %v983, %v985
    %v987 = vrot.slane %v980, %v986
    %v988 = vcombine.low %v963, %v971
    %v989 = vcombine.high %v963, %v971
    %v991 = vunpack.c.l.s4 1934713408
    %v992 = vunpack.c.0.s8 %v991
    %v993 = vlaneseq
    %v994 = vshrl.u32 %v993, 7
    %v995 = vsub.s32 %v992, %v994
    %v996 = vrot.slane %v988, %v995
    %v998 = vunpack.c.l.s4 1934713408
    %v999 = vunpack.c.0.s8 %v998
    %v1000 = vlaneseq
    %v1001 = vshrl.u32 %v1000, 7
    %v1002 = vsub.s32 %v999, %v1001
    %v1003 = vrot.slane %v989, %v1002
    %v1004 = vcombine.low %v979, %v987
    %v1005 = vcombine.high %v979, %v987
    %v1007 = vunpack.c.l.s4 1934713408
    %v1008 = vunpack.c.0.s8 %v1007
    %v1009 = vlaneseq
    %v1010 = vshrl.u32 %v1009, 7
    %v1011 = vsub.s32 %v1008, %v1010
    %v1012 = vrot.slane %v1004, %v1011
    %v1014 = vunpack.c.l.s4 1934713408
    %v1015 = vunpack.c.0.s8 %v1014
    %v1016 = vlaneseq
    %v1017 = vshrl.u32 %v1016, 7
    %v1018 = vsub.s32 %v1015, %v1017
    %v1019 = vrot.slane %v1005, %v1018
    %v1020 = vcombine.low %v996, %v1012
    %v1021 = vcombine.high %v996, %v1012
    %v1022 = vcombine.low %v1003, %v1019
    %v1023 = vcombine.high %v1003, %v1019
    %vm1024 = vcmask 64512
    %v1026 = vsel %vm1024, %v360, 0
    %v1029 = vsel %vm1024, %v428, 0
    %v1032 = vsel %vm1024, %v656, 0
    %v1035 = vsel %vm1024, %v724, 0
    %1037 = vmatprep.subr.mxu0 0.0
    %1038 = vmatpush1.xpose.msra.mxu0 0.0
    %1039 = vmatprep.subr.mxu0 0.0
    %1040 = vmatpush1.xpose.msra.mxu0 0.0
    %1041 = vmatprep.subr.mxu0 0.0
    %1042 = vmatpush1.xpose.msra.mxu0 0.0
    %1043 = vmatprep.subr.mxu0 0.0
    %1044 = vmatpush1.xpose.msra.mxu0 0.0
    %1045 = vmatprep.subr.mxu0 0.0
    %1046 = vmatpush1.xpose.msra.mxu0 0.0
    %1047 = vmatprep.subr.mxu0 0.0
    %1048 = vmatpush1.xpose.msra.mxu0 0.0
    %1049 = vmatprep.subr.mxu0 0.0
    %1050 = vmatpush1.xpose.msra.mxu0 0.0
    %1051 = vmatprep.subr.mxu0 0.0
    %1052 = vmatpush1.xpose.msra.mxu0 0.0
    %1053 = vmatprep.subr.mxu0 0.0
    %1054 = vmatpush1.xpose.msra.mxu0 0.0
    %1055 = vmatprep.subr.mxu0 0.0
    %1056 = vmatpush1.xpose.msra.mxu0 0.0
    %1057 = vmatprep.subr.mxu0 0.0
    %1058 = vmatpush1.xpose.msra.mxu0 0.0
    %1059 = vmatprep.subr.mxu0 0.0
    %1060 = vmatpush1.xpose.msra.mxu0 0.0
    %1061 = vmatprep.subr.mxu0 0.0
    %1062 = vmatpush1.xpose.msra.mxu0 0.0
    %1063 = vmatprep.subr.mxu0 0.0
    %1064 = vmatpush1.xpose.msra.mxu0 0.0
    %1065 = vmatprep.subr.mxu0 0.0
    %1066 = vmatpush1.xpose.msra.mxu0 %v1035
    %1067 = vmatprep.subr.mxu0 0.0
    %1068 = vmatpush1.xpose.msra.mxu0 %v1032
    %1069 = vmatprep.subr.mxu0 0.0
    %1070 = vmatpush2.xpose.msra.mxu0 0.0
    %1071 = vmatprep.subr.mxu0 0.0
    %1072 = vmatpush2.xpose.msra.mxu0 0.0
    %1073 = vmatprep.subr.mxu0 0.0
    %1074 = vmatpush2.xpose.msra.mxu0 0.0
    %1075 = vmatprep.subr.mxu0 0.0
    %1076 = vmatpush2.xpose.msra.mxu0 0.0
    %1077 = vmatprep.subr.mxu0 0.0
    %1078 = vmatpush2.xpose.msra.mxu0 0.0
    %1079 = vmatprep.subr.mxu0 0.0
    %1080 = vmatpush2.xpose.msra.mxu0 0.0
    %1081 = vmatprep.subr.mxu0 0.0
    %1082 = vmatpush2.xpose.msra.mxu0 0.0
    %1083 = vmatprep.subr.mxu0 0.0
    %1084 = vmatpush2.xpose.msra.mxu0 0.0
    %1085 = vmatprep.subr.mxu0 0.0
    %1086 = vmatpush2.xpose.msra.mxu0 0.0
    %1087 = vmatprep.subr.mxu0 0.0
    %1088 = vmatpush2.xpose.msra.mxu0 0.0
    %1089 = vmatprep.subr.mxu0 0.0
    %1090 = vmatpush2.xpose.msra.mxu0 0.0
    %1091 = vmatprep.subr.mxu0 0.0
    %1092 = vmatpush2.xpose.msra.mxu0 0.0
    %1093 = vmatprep.subr.mxu0 0.0
    %1094 = vmatpush2.xpose.msra.mxu0 0.0
    %1095 = vmatprep.subr.mxu0 0.0
    %1096 = vmatpush2.xpose.msra.mxu0 0.0
    %1097 = vmatprep.subr.mxu0 0.0
    %1098 = vmatpush2.xpose.msra.mxu0 0.0
    %1099 = vmatprep.subr.mxu0 0.0
    %1100 = vmatpush2.xpose.msra.mxu0 0.0
    %1101 = vmatprep.mubr.f32.mxu0 0.0
    %1102 = vmatmul.mubr.f32.gmra.mxu0 %v1026
    %v1103 = vpop.f32.mrf.mxu0
    %v1104 = vadd.f32 %v52, %v1103
    %v1105 = vpop.f32.mrf.mxu0
    %1106 = vmatprep.mubr.f32.mxu0 0.0
    %1107 = vmatmul.mubr.f32.gmra.mxu0 %v1029
    %v1108 = vpop.f32.mrf.mxu0
    %v1109 = vadd.f32 %v53, %v1108
    %v1110 = vpop.f32.mrf.mxu0
    %1111 = vdwg.mxu0
    %v1113 = vsel %vm1024, %v361, 0
    %v1116 = vsel %vm1024, %v429, 0
    %v1119 = vsel %vm1024, %v657, 0
    %v1122 = vsel %vm1024, %v725, 0
    %1124 = vmatprep.subr.mxu0 0.0
    %1125 = vmatpush1.xpose.msra.mxu0 0.0
    %1126 = vmatprep.subr.mxu0 0.0
    %1127 = vmatpush1.xpose.msra.mxu0 0.0
    %1128 = vmatprep.subr.mxu0 0.0
    %1129 = vmatpush1.xpose.msra.mxu0 0.0
    %1130 = vmatprep.subr.mxu0 0.0
    %1131 = vmatpush1.xpose.msra.mxu0 0.0
    %1132 = vmatprep.subr.mxu0 0.0
    %1133 = vmatpush1.xpose.msra.mxu0 0.0
    %1134 = vmatprep.subr.mxu0 0.0
    %1135 = vmatpush1.xpose.msra.mxu0 0.0
    %1136 = vmatprep.subr.mxu0 0.0
    %1137 = vmatpush1.xpose.msra.mxu0 0.0
    %1138 = vmatprep.subr.mxu0 0.0
    %1139 = vmatpush1.xpose.msra.mxu0 0.0
    %1140 = vmatprep.subr.mxu0 0.0
    %1141 = vmatpush1.xpose.msra.mxu0 0.0
    %1142 = vmatprep.subr.mxu0 0.0
    %1143 = vmatpush1.xpose.msra.mxu0 0.0
    %1144 = vmatprep.subr.mxu0 0.0
    %1145 = vmatpush1.xpose.msra.mxu0 0.0
    %1146 = vmatprep.subr.mxu0 0.0
    %1147 = vmatpush1.xpose.msra.mxu0 0.0
    %1148 = vmatprep.subr.mxu0 0.0
    %1149 = vmatpush1.xpose.msra.mxu0 0.0
    %1150 = vmatprep.subr.mxu0 0.0
    %1151 = vmatpush1.xpose.msra.mxu0 0.0
    %1152 = vmatprep.subr.mxu0 0.0
    %1153 = vmatpush1.xpose.msra.mxu0 %v1122
    %1154 = vmatprep.subr.mxu0 0.0
    %1155 = vmatpush1.xpose.msra.mxu0 %v1119
    %1156 = vmatprep.subr.mxu0 0.0
    %1157 = vmatpush2.xpose.msra.mxu0 0.0
    %1158 = vmatprep.subr.mxu0 0.0
    %1159 = vmatpush2.xpose.msra.mxu0 0.0
    %1160 = vmatprep.subr.mxu0 0.0
    %1161 = vmatpush2.xpose.msra.mxu0 0.0
    %1162 = vmatprep.subr.mxu0 0.0
    %1163 = vmatpush2.xpose.msra.mxu0 0.0
    %1164 = vmatprep.subr.mxu0 0.0
    %1165 = vmatpush2.xpose.msra.mxu0 0.0
    %1166 = vmatprep.subr.mxu0 0.0
    %1167 = vmatpush2.xpose.msra.mxu0 0.0
    %1168 = vmatprep.subr.mxu0 0.0
    %1169 = vmatpush2.xpose.msra.mxu0 0.0
    %1170 = vmatprep.subr.mxu0 0.0
    %1171 = vmatpush2.xpose.msra.mxu0 0.0
    %1172 = vmatprep.subr.mxu0 0.0
    %1173 = vmatpush2.xpose.msra.mxu0 0.0
    %1174 = vmatprep.subr.mxu0 0.0
    %1175 = vmatpush2.xpose.msra.mxu0 0.0
    %1176 = vmatprep.subr.mxu0 0.0
    %1177 = vmatpush2.xpose.msra.mxu0 0.0
    %1178 = vmatprep.subr.mxu0 0.0
    %1179 = vmatpush2.xpose.msra.mxu0 0.0
    %1180 = vmatprep.subr.mxu0 0.0
    %1181 = vmatpush2.xpose.msra.mxu0 0.0
    %1182 = vmatprep.subr.mxu0 0.0
    %1183 = vmatpush2.xpose.msra.mxu0 0.0
    %1184 = vmatprep.subr.mxu0 0.0
    %1185 = vmatpush2.xpose.msra.mxu0 0.0
    %1186 = vmatprep.subr.mxu0 0.0
    %1187 = vmatpush2.xpose.msra.mxu0 0.0
    %1188 = vmatprep.mubr.f32.mxu0 0.0
    %1189 = vmatmul.mubr.f32.gmra.mxu0 %v1113
    %v1190 = vpop.f32.mrf.mxu0
    %v1191 = vadd.f32 %v52, %v1190
    %v1192 = vpop.f32.mrf.mxu0
    %1193 = vmatprep.mubr.f32.mxu0 0.0
    %1194 = vmatmul.mubr.f32.gmra.mxu0 %v1116
    %v1195 = vpop.f32.mrf.mxu0
    %v1196 = vadd.f32 %v53, %v1195
    %v1197 = vpop.f32.mrf.mxu0
    %1198 = vdwg.mxu0
    %v1200 = vsel %vm1024, %v362, 0
    %v1203 = vsel %vm1024, %v430, 0
    %v1206 = vsel %vm1024, %v658, 0
    %v1209 = vsel %vm1024, %v726, 0
    %1211 = vmatprep.subr.mxu0 0.0
    %1212 = vmatpush1.xpose.msra.mxu0 0.0
    %1213 = vmatprep.subr.mxu0 0.0
    %1214 = vmatpush1.xpose.msra.mxu0 0.0
    %1215 = vmatprep.subr.mxu0 0.0
    %1216 = vmatpush1.xpose.msra.mxu0 0.0
    %1217 = vmatprep.subr.mxu0 0.0
    %1218 = vmatpush1.xpose.msra.mxu0 0.0
    %1219 = vmatprep.subr.mxu0 0.0
    %1220 = vmatpush1.xpose.msra.mxu0 0.0
    %1221 = vmatprep.subr.mxu0 0.0
    %1222 = vmatpush1.xpose.msra.mxu0 0.0
    %1223 = vmatprep.subr.mxu0 0.0
    %1224 = vmatpush1.xpose.msra.mxu0 0.0
    %1225 = vmatprep.subr.mxu0 0.0
    %1226 = vmatpush1.xpose.msra.mxu0 0.0
    %1227 = vmatprep.subr.mxu0 0.0
    %1228 = vmatpush1.xpose.msra.mxu0 0.0
    %1229 = vmatprep.subr.mxu0 0.0
    %1230 = vmatpush1.xpose.msra.mxu0 0.0
    %1231 = vmatprep.subr.mxu0 0.0
    %1232 = vmatpush1.xpose.msra.mxu0 0.0
    %1233 = vmatprep.subr.mxu0 0.0
    %1234 = vmatpush1.xpose.msra.mxu0 0.0
    %1235 = vmatprep.subr.mxu0 0.0
    %1236 = vmatpush1.xpose.msra.mxu0 0.0
    %1237 = vmatprep.subr.mxu0 0.0
    %1238 = vmatpush1.xpose.msra.mxu0 0.0
    %1239 = vmatprep.subr.mxu0 0.0
    %1240 = vmatpush1.xpose.msra.mxu0 %v1209
    %1241 = vmatprep.subr.mxu0 0.0
    %1242 = vmatpush1.xpose.msra.mxu0 %v1206
    %1243 = vmatprep.subr.mxu0 0.0
    %1244 = vmatpush2.xpose.msra.mxu0 0.0
    %1245 = vmatprep.subr.mxu0 0.0
    %1246 = vmatpush2.xpose.msra.mxu0 0.0
    %1247 = vmatprep.subr.mxu0 0.0
    %1248 = vmatpush2.xpose.msra.mxu0 0.0
    %1249 = vmatprep.subr.mxu0 0.0
    %1250 = vmatpush2.xpose.msra.mxu0 0.0
    %1251 = vmatprep.subr.mxu0 0.0
    %1252 = vmatpush2.xpose.msra.mxu0 0.0
    %1253 = vmatprep.subr.mxu0 0.0
    %1254 = vmatpush2.xpose.msra.mxu0 0.0
    %1255 = vmatprep.subr.mxu0 0.0
    %1256 = vmatpush2.xpose.msra.mxu0 0.0
    %1257 = vmatprep.subr.mxu0 0.0
    %1258 = vmatpush2.xpose.msra.mxu0 0.0
    %1259 = vmatprep.subr.mxu0 0.0
    %1260 = vmatpush2.xpose.msra.mxu0 0.0
    %1261 = vmatprep.subr.mxu0 0.0
    %1262 = vmatpush2.xpose.msra.mxu0 0.0
    %1263 = vmatprep.subr.mxu0 0.0
    %1264 = vmatpush2.xpose.msra.mxu0 0.0
    %1265 = vmatprep.subr.mxu0 0.0
    %1266 = vmatpush2.xpose.msra.mxu0 0.0
    %1267 = vmatprep.subr.mxu0 0.0
    %1268 = vmatpush2.xpose.msra.mxu0 0.0
    %1269 = vmatprep.subr.mxu0 0.0
    %1270 = vmatpush2.xpose.msra.mxu0 0.0
    %1271 = vmatprep.subr.mxu0 0.0
    %1272 = vmatpush2.xpose.msra.mxu0 0.0
    %1273 = vmatprep.subr.mxu0 0.0
    %1274 = vmatpush2.xpose.msra.mxu0 0.0
    %1275 = vmatprep.mubr.f32.mxu0 0.0
    %1276 = vmatmul.mubr.f32.gmra.mxu0 %v1200
    %v1277 = vpop.f32.mrf.mxu0
    %v1278 = vadd.f32 %v52, %v1277
    %v1279 = vpop.f32.mrf.mxu0
    %1280 = vmatprep.mubr.f32.mxu0 0.0
    %1281 = vmatmul.mubr.f32.gmra.mxu0 %v1203
    %v1282 = vpop.f32.mrf.mxu0
    %v1283 = vadd.f32 %v53, %v1282
    %v1284 = vpop.f32.mrf.mxu0
    %1285 = vdwg.mxu0
    %v1287 = vsel %vm1024, %v363, 0
    %v1290 = vsel %vm1024, %v431, 0
    %v1293 = vsel %vm1024, %v659, 0
    %v1296 = vsel %vm1024, %v727, 0
    %1298 = vmatprep.subr.mxu0 0.0
    %1299 = vmatpush1.xpose.msra.mxu0 0.0
    %1300 = vmatprep.subr.mxu0 0.0
    %1301 = vmatpush1.xpose.msra.mxu0 0.0
    %1302 = vmatprep.subr.mxu0 0.0
    %1303 = vmatpush1.xpose.msra.mxu0 0.0
    %1304 = vmatprep.subr.mxu0 0.0
    %1305 = vmatpush1.xpose.msra.mxu0 0.0
    %1306 = vmatprep.subr.mxu0 0.0
    %1307 = vmatpush1.xpose.msra.mxu0 0.0
    %1308 = vmatprep.subr.mxu0 0.0
    %1309 = vmatpush1.xpose.msra.mxu0 0.0
    %1310 = vmatprep.subr.mxu0 0.0
    %1311 = vmatpush1.xpose.msra.mxu0 0.0
    %1312 = vmatprep.subr.mxu0 0.0
    %1313 = vmatpush1.xpose.msra.mxu0 0.0
    %1314 = vmatprep.subr.mxu0 0.0
    %1315 = vmatpush1.xpose.msra.mxu0 0.0
    %1316 = vmatprep.subr.mxu0 0.0
    %1317 = vmatpush1.xpose.msra.mxu0 0.0
    %1318 = vmatprep.subr.mxu0 0.0
    %1319 = vmatpush1.xpose.msra.mxu0 0.0
    %1320 = vmatprep.subr.mxu0 0.0
    %1321 = vmatpush1.xpose.msra.mxu0 0.0
    %1322 = vmatprep.subr.mxu0 0.0
    %1323 = vmatpush1.xpose.msra.mxu0 0.0
    %1324 = vmatprep.subr.mxu0 0.0
    %1325 = vmatpush1.xpose.msra.mxu0 0.0
    %1326 = vmatprep.subr.mxu0 0.0
    %1327 = vmatpush1.xpose.msra.mxu0 %v1296
    %1328 = vmatprep.subr.mxu0 0.0
    %1329 = vmatpush1.xpose.msra.mxu0 %v1293
    %1330 = vmatprep.subr.mxu0 0.0
    %1331 = vmatpush2.xpose.msra.mxu0 0.0
    %1332 = vmatprep.subr.mxu0 0.0
    %1333 = vmatpush2.xpose.msra.mxu0 0.0
    %1334 = vmatprep.subr.mxu0 0.0
    %1335 = vmatpush2.xpose.msra.mxu0 0.0
    %1336 = vmatprep.subr.mxu0 0.0
    %1337 = vmatpush2.xpose.msra.mxu0 0.0
    %1338 = vmatprep.subr.mxu0 0.0
    %1339 = vmatpush2.xpose.msra.mxu0 0.0
    %1340 = vmatprep.subr.mxu0 0.0
    %1341 = vmatpush2.xpose.msra.mxu0 0.0
    %1342 = vmatprep.subr.mxu0 0.0
    %1343 = vmatpush2.xpose.msra.mxu0 0.0
    %1344 = vmatprep.subr.mxu0 0.0
    %1345 = vmatpush2.xpose.msra.mxu0 0.0
    %1346 = vmatprep.subr.mxu0 0.0
    %1347 = vmatpush2.xpose.msra.mxu0 0.0
    %1348 = vmatprep.subr.mxu0 0.0
    %1349 = vmatpush2.xpose.msra.mxu0 0.0
    %1350 = vmatprep.subr.mxu0 0.0
    %1351 = vmatpush2.xpose.msra.mxu0 0.0
    %1352 = vmatprep.subr.mxu0 0.0
    %1353 = vmatpush2.xpose.msra.mxu0 0.0
    %1354 = vmatprep.subr.mxu0 0.0
    %1355 = vmatpush2.xpose.msra.mxu0 0.0
    %1356 = vmatprep.subr.mxu0 0.0
    %1357 = vmatpush2.xpose.msra.mxu0 0.0
    %1358 = vmatprep.subr.mxu0 0.0
    %1359 = vmatpush2.xpose.msra.mxu0 0.0
    %1360 = vmatprep.subr.mxu0 0.0
    %1361 = vmatpush2.xpose.msra.mxu0 0.0
    %1362 = vmatprep.mubr.f32.mxu0 0.0
    %1363 = vmatmul.mubr.f32.gmra.mxu0 %v1287
    %v1364 = vpop.f32.mrf.mxu0
    %v1365 = vadd.f32 %v52, %v1364
    %v1366 = vpop.f32.mrf.mxu0
    %1367 = vmatprep.mubr.f32.mxu0 0.0
    %1368 = vmatmul.mubr.f32.gmra.mxu0 %v1290
    %v1369 = vpop.f32.mrf.mxu0
    %v1370 = vadd.f32 %v53, %v1369
    %v1371 = vpop.f32.mrf.mxu0
    %1372 = vdwg.mxu0
    %vm1373 = vcmask 130048
    %v1374 = vsel %vm1373, %v1104, -inf
    %1375 = vmax.xlane.f32.xlu0 %v1374
    %v1376 = vpop.xlane.xlu0 %1375
    %v1377 = vsel %vm1373, %v1109, -inf
    %1378 = vmax.xlane.f32.xlu0 %v1377
    %v1379 = vpop.xlane.xlu0 %1378
    %v1380 = vsel %vm1373, %v1191, -inf
    %1381 = vmax.xlane.f32.xlu0 %v1380
    %v1382 = vpop.xlane.xlu0 %1381
    %v1383 = vsel %vm1373, %v1196, -inf
    %1384 = vmax.xlane.f32.xlu0 %v1383
    %v1385 = vpop.xlane.xlu0 %1384
    %v1386 = vsel %vm1373, %v1278, -inf
    %1387 = vmax.xlane.f32.xlu0 %v1386
    %v1388 = vpop.xlane.xlu0 %1387
    %v1389 = vsel %vm1373, %v1283, -inf
    %1390 = vmax.xlane.f32.xlu0 %v1389
    %v1391 = vpop.xlane.xlu0 %1390
    %v1392 = vsel %vm1373, %v1365, -inf
    %1393 = vmax.xlane.f32.xlu0 %v1392
    %v1394 = vpop.xlane.xlu0 %1393
    %v1395 = vsel %vm1373, %v1370, -inf
    %1396 = vmax.xlane.f32.xlu0 %v1395
    %v1397 = vpop.xlane.xlu0 %1396
    %v1398 = vsub.f32 %v1104, %v1376
    %v1399 = vsub.f32 %v1109, %v1379
    %v1400 = vsub.f32 %v1191, %v1382
    %v1401 = vsub.f32 %v1196, %v1385
    %v1402 = vsub.f32 %v1278, %v1388
    %v1403 = vsub.f32 %v1283, %v1391
    %v1404 = vsub.f32 %v1365, %v1394
    %v1405 = vsub.f32 %v1370, %v1397
    %v1406 = vmul.f32 %v1398, 1.442695
    %v1407 = vpow.pop %v1406
    %v1408 = vmul.f32 %v1399, 1.442695
    %v1409 = vpow.pop %v1408
    %v1410 = vmul.f32 %v1400, 1.442695
    %v1411 = vpow.pop %v1410
    %v1412 = vmul.f32 %v1401, 1.442695
    %v1413 = vpow.pop %v1412
    %v1414 = vmul.f32 %v1402, 1.442695
    %v1415 = vpow.pop %v1414
    %v1416 = vmul.f32 %v1403, 1.442695
    %v1417 = vpow.pop %v1416
    %v1418 = vmul.f32 %v1404, 1.442695
    %v1419 = vpow.pop %v1418
    %v1420 = vmul.f32 %v1405, 1.442695
    %v1421 = vpow.pop %v1420
    %v1422 = vsel %vm1373, %v1407, 0.0
    %1423 = vadd.xlane.f32.xlu0 %v1422
    %v1424 = vpop.xlane.xlu0 %1423
    %v1425 = vsel %vm1373, %v1409, 0.0
    %1426 = vadd.xlane.f32.xlu0 %v1425
    %v1427 = vpop.xlane.xlu0 %1426
    %v1428 = vsel %vm1373, %v1411, 0.0
    %1429 = vadd.xlane.f32.xlu0 %v1428
    %v1430 = vpop.xlane.xlu0 %1429
    %v1431 = vsel %vm1373, %v1413, 0.0
    %1432 = vadd.xlane.f32.xlu0 %v1431
    %v1433 = vpop.xlane.xlu0 %1432
    %v1434 = vsel %vm1373, %v1415, 0.0
    %1435 = vadd.xlane.f32.xlu0 %v1434
    %v1436 = vpop.xlane.xlu0 %1435
    %v1437 = vsel %vm1373, %v1417, 0.0
    %1438 = vadd.xlane.f32.xlu0 %v1437
    %v1439 = vpop.xlane.xlu0 %1438
    %v1440 = vsel %vm1373, %v1419, 0.0
    %1441 = vadd.xlane.f32.xlu0 %v1440
    %v1442 = vpop.xlane.xlu0 %1441
    %v1443 = vsel %vm1373, %v1421, 0.0
    %1444 = vadd.xlane.f32.xlu0 %v1443
    %v1445 = vpop.xlane.xlu0 %1444
    %v1446 = vrcp.pop %v1424
    %v1447 = vmul.f32 %v1407, %v1446
    %v1448 = vrcp.pop %v1427
    %v1449 = vmul.f32 %v1409, %v1448
    %v1450 = vrcp.pop %v1430
    %v1451 = vmul.f32 %v1411, %v1450
    %v1452 = vrcp.pop %v1433
    %v1453 = vmul.f32 %v1413, %v1452
    %v1454 = vrcp.pop %v1436
    %v1455 = vmul.f32 %v1415, %v1454
    %v1456 = vrcp.pop %v1439
    %v1457 = vmul.f32 %v1417, %v1456
    %v1458 = vrcp.pop %v1442
    %v1459 = vmul.f32 %v1419, %v1458
    %v1460 = vrcp.pop %v1445
    %v1461 = vmul.f32 %v1421, %v1460
    %v1463 = vsel %vm1373, %v1447, 0
    %v1466 = vsel %vm1373, %v1449, 0
    %1468 = vmatprep.subr.mxu0 0.0
    %1469 = vmatpush1.msra.mxu0 0.0
    %1470 = vmatprep.subr.mxu0 0.0
    %1471 = vmatpush1.msra.mxu0 0.0
    %1472 = vmatprep.subr.mxu0 0.0
    %1473 = vmatpush1.msra.mxu0 0.0
    %1474 = vmatprep.subr.mxu0 0.0
    %1475 = vmatpush1.msra.mxu0 0.0
    %1476 = vmatprep.subr.mxu0 0.0
    %1477 = vmatpush1.msra.mxu0 0.0
    %1478 = vmatprep.subr.mxu0 0.0
    %1479 = vmatpush1.msra.mxu0 0.0
    %1480 = vmatprep.subr.mxu0 0.0
    %1481 = vmatpush1.msra.mxu0 0.0
    %1482 = vmatprep.subr.mxu0 0.0
    %1483 = vmatpush1.msra.mxu0 0.0
    %1484 = vmatprep.subr.mxu0 0.0
    %1485 = vmatpush1.msra.mxu0 0.0
    %1486 = vmatprep.subr.mxu0 0.0
    %1487 = vmatpush1.msra.mxu0 0.0
    %1488 = vmatprep.subr.mxu0 0.0
    %1489 = vmatpush1.msra.mxu0 0.0
    %1490 = vmatprep.subr.mxu0 0.0
    %1491 = vmatpush1.msra.mxu0 0.0
    %1492 = vmatprep.subr.mxu0 0.0
    %1493 = vmatpush1.msra.mxu0 0.0
    %1494 = vmatprep.subr.mxu0 0.0
    %1495 = vmatpush1.msra.mxu0 0.0
    %1496 = vmatprep.subr.mxu0 0.0
    %1497 = vmatpush1.msra.mxu0 %v1020
    %1498 = vmatprep.subr.mxu0 0.0
    %1499 = vmatpush1.msra.mxu0 %v952
    %1500 = vmatprep.subr.mxu0 0.0
    %1501 = vmatpush2.msra.mxu0 0.0
    %1502 = vmatprep.subr.mxu0 0.0
    %1503 = vmatpush2.msra.mxu0 0.0
    %1504 = vmatprep.subr.mxu0 0.0
    %1505 = vmatpush2.msra.mxu0 0.0
    %1506 = vmatprep.subr.mxu0 0.0
    %1507 = vmatpush2.msra.mxu0 0.0
    %1508 = vmatprep.subr.mxu0 0.0
    %1509 = vmatpush2.msra.mxu0 0.0
    %1510 = vmatprep.subr.mxu0 0.0
    %1511 = vmatpush2.msra.mxu0 0.0
    %1512 = vmatprep.subr.mxu0 0.0
    %1513 = vmatpush2.msra.mxu0 0.0
    %1514 = vmatprep.subr.mxu0 0.0
    %1515 = vmatpush2.msra.mxu0 0.0
    %1516 = vmatprep.subr.mxu0 0.0
    %1517 = vmatpush2.msra.mxu0 0.0
    %1518 = vmatprep.subr.mxu0 0.0
    %1519 = vmatpush2.msra.mxu0 0.0
    %1520 = vmatprep.subr.mxu0 0.0
    %1521 = vmatpush2.msra.mxu0 0.0
    %1522 = vmatprep.subr.mxu0 0.0
    %1523 = vmatpush2.msra.mxu0 0.0
    %1524 = vmatprep.subr.mxu0 0.0
    %1525 = vmatpush2.msra.mxu0 0.0
    %1526 = vmatprep.subr.mxu0 0.0
    %1527 = vmatpush2.msra.mxu0 0.0
    %1528 = vmatprep.subr.mxu0 0.0
    %1529 = vmatpush2.msra.mxu0 0.0
    %1530 = vmatprep.subr.mxu0 0.0
    %1531 = vmatpush2.msra.mxu0 0.0
    %1532 = vmatprep.mubr.f32.mxu0 0.0
    %1533 = vmatmul.mubr.f32.gmra.mxu0 %v1463
    %v1534 = vpop.f32.mrf.mxu0
    %v1535 = vadd.f32 0.0, %v1534
    %v1536 = vpop.f32.mrf.mxu0
    %1537 = vmatprep.mubr.f32.mxu0 0.0
    %1538 = vmatmul.mubr.f32.gmra.mxu0 %v1466
    %v1539 = vpop.f32.mrf.mxu0
    %v1540 = vadd.f32 0.0, %v1539
    %v1541 = vpop.f32.mrf.mxu0
    %1542 = vdwg.mxu0
    %v1544 = vsel %vm1373, %v1451, 0
    %v1547 = vsel %vm1373, %v1453, 0
    %1549 = vmatprep.subr.mxu0 0.0
    %1550 = vmatpush1.msra.mxu0 0.0
    %1551 = vmatprep.subr.mxu0 0.0
    %1552 = vmatpush1.msra.mxu0 0.0
    %1553 = vmatprep.subr.mxu0 0.0
    %1554 = vmatpush1.msra.mxu0 0.0
    %1555 = vmatprep.subr.mxu0 0.0
    %1556 = vmatpush1.msra.mxu0 0.0
    %1557 = vmatprep.subr.mxu0 0.0
    %1558 = vmatpush1.msra.mxu0 0.0
    %1559 = vmatprep.subr.mxu0 0.0
    %1560 = vmatpush1.msra.mxu0 0.0
    %1561 = vmatprep.subr.mxu0 0.0
    %1562 = vmatpush1.msra.mxu0 0.0
    %1563 = vmatprep.subr.mxu0 0.0
    %1564 = vmatpush1.msra.mxu0 0.0
    %1565 = vmatprep.subr.mxu0 0.0
    %1566 = vmatpush1.msra.mxu0 0.0
    %1567 = vmatprep.subr.mxu0 0.0
    %1568 = vmatpush1.msra.mxu0 0.0
    %1569 = vmatprep.subr.mxu0 0.0
    %1570 = vmatpush1.msra.mxu0 0.0
    %1571 = vmatprep.subr.mxu0 0.0
    %1572 = vmatpush1.msra.mxu0 0.0
    %1573 = vmatprep.subr.mxu0 0.0
    %1574 = vmatpush1.msra.mxu0 0.0
    %1575 = vmatprep.subr.mxu0 0.0
    %1576 = vmatpush1.msra.mxu0 0.0
    %1577 = vmatprep.subr.mxu0 0.0
    %1578 = vmatpush1.msra.mxu0 %v1021
    %1579 = vmatprep.subr.mxu0 0.0
    %1580 = vmatpush1.msra.mxu0 %v953
    %1581 = vmatprep.subr.mxu0 0.0
    %1582 = vmatpush2.msra.mxu0 0.0
    %1583 = vmatprep.subr.mxu0 0.0
    %1584 = vmatpush2.msra.mxu0 0.0
    %1585 = vmatprep.subr.mxu0 0.0
    %1586 = vmatpush2.msra.mxu0 0.0
    %1587 = vmatprep.subr.mxu0 0.0
    %1588 = vmatpush2.msra.mxu0 0.0
    %1589 = vmatprep.subr.mxu0 0.0
    %1590 = vmatpush2.msra.mxu0 0.0
    %1591 = vmatprep.subr.mxu0 0.0
    %1592 = vmatpush2.msra.mxu0 0.0
    %1593 = vmatprep.subr.mxu0 0.0
    %1594 = vmatpush2.msra.mxu0 0.0
    %1595 = vmatprep.subr.mxu0 0.0
    %1596 = vmatpush2.msra.mxu0 0.0
    %1597 = vmatprep.subr.mxu0 0.0
    %1598 = vmatpush2.msra.mxu0 0.0
    %1599 = vmatprep.subr.mxu0 0.0
    %1600 = vmatpush2.msra.mxu0 0.0
    %1601 = vmatprep.subr.mxu0 0.0
    %1602 = vmatpush2.msra.mxu0 0.0
    %1603 = vmatprep.subr.mxu0 0.0
    %1604 = vmatpush2.msra.mxu0 0.0
    %1605 = vmatprep.subr.mxu0 0.0
    %1606 = vmatpush2.msra.mxu0 0.0
    %1607 = vmatprep.subr.mxu0 0.0
    %1608 = vmatpush2.msra.mxu0 0.0
    %1609 = vmatprep.subr.mxu0 0.0
    %1610 = vmatpush2.msra.mxu0 0.0
    %1611 = vmatprep.subr.mxu0 0.0
    %1612 = vmatpush2.msra.mxu0 0.0
    %1613 = vmatprep.mubr.f32.mxu0 0.0
    %1614 = vmatmul.mubr.f32.gmra.mxu0 %v1544
    %v1615 = vpop.f32.mrf.mxu0
    %v1616 = vadd.f32 0.0, %v1615
    %v1617 = vpop.f32.mrf.mxu0
    %1618 = vmatprep.mubr.f32.mxu0 0.0
    %1619 = vmatmul.mubr.f32.gmra.mxu0 %v1547
    %v1620 = vpop.f32.mrf.mxu0
    %v1621 = vadd.f32 0.0, %v1620
    %v1622 = vpop.f32.mrf.mxu0
    %1623 = vdwg.mxu0
    %v1625 = vsel %vm1373, %v1455, 0
    %v1628 = vsel %vm1373, %v1457, 0
    %1630 = vmatprep.subr.mxu0 0.0
    %1631 = vmatpush1.msra.mxu0 0.0
    %1632 = vmatprep.subr.mxu0 0.0
    %1633 = vmatpush1.msra.mxu0 0.0
    %1634 = vmatprep.subr.mxu0 0.0
    %1635 = vmatpush1.msra.mxu0 0.0
    %1636 = vmatprep.subr.mxu0 0.0
    %1637 = vmatpush1.msra.mxu0 0.0
    %1638 = vmatprep.subr.mxu0 0.0
    %1639 = vmatpush1.msra.mxu0 0.0
    %1640 = vmatprep.subr.mxu0 0.0
    %1641 = vmatpush1.msra.mxu0 0.0
    %1642 = vmatprep.subr.mxu0 0.0
    %1643 = vmatpush1.msra.mxu0 0.0
    %1644 = vmatprep.subr.mxu0 0.0
    %1645 = vmatpush1.msra.mxu0 0.0
    %1646 = vmatprep.subr.mxu0 0.0
    %1647 = vmatpush1.msra.mxu0 0.0
    %1648 = vmatprep.subr.mxu0 0.0
    %1649 = vmatpush1.msra.mxu0 0.0
    %1650 = vmatprep.subr.mxu0 0.0
    %1651 = vmatpush1.msra.mxu0 0.0
    %1652 = vmatprep.subr.mxu0 0.0
    %1653 = vmatpush1.msra.mxu0 0.0
    %1654 = vmatprep.subr.mxu0 0.0
    %1655 = vmatpush1.msra.mxu0 0.0
    %1656 = vmatprep.subr.mxu0 0.0
    %1657 = vmatpush1.msra.mxu0 0.0
    %1658 = vmatprep.subr.mxu0 0.0
    %1659 = vmatpush1.msra.mxu0 %v1022
    %1660 = vmatprep.subr.mxu0 0.0
    %1661 = vmatpush1.msra.mxu0 %v954
    %1662 = vmatprep.subr.mxu0 0.0
    %1663 = vmatpush2.msra.mxu0 0.0
    %1664 = vmatprep.subr.mxu0 0.0
    %1665 = vmatpush2.msra.mxu0 0.0
    %1666 = vmatprep.subr.mxu0 0.0
    %1667 = vmatpush2.msra.mxu0 0.0
    %1668 = vmatprep.subr.mxu0 0.0
    %1669 = vmatpush2.msra.mxu0 0.0
    %1670 = vmatprep.subr.mxu0 0.0
    %1671 = vmatpush2.msra.mxu0 0.0
    %1672 = vmatprep.subr.mxu0 0.0
    %1673 = vmatpush2.msra.mxu0 0.0
    %1674 = vmatprep.subr.mxu0 0.0
    %1675 = vmatpush2.msra.mxu0 0.0
    %1676 = vmatprep.subr.mxu0 0.0
    %1677 = vmatpush2.msra.mxu0 0.0
    %1678 = vmatprep.subr.mxu0 0.0
    %1679 = vmatpush2.msra.mxu0 0.0
    %1680 = vmatprep.subr.mxu0 0.0
    %1681 = vmatpush2.msra.mxu0 0.0
    %1682 = vmatprep.subr.mxu0 0.0
    %1683 = vmatpush2.msra.mxu0 0.0
    %1684 = vmatprep.subr.mxu0 0.0
    %1685 = vmatpush2.msra.mxu0 0.0
    %1686 = vmatprep.subr.mxu0 0.0
    %1687 = vmatpush2.msra.mxu0 0.0
    %1688 = vmatprep.subr.mxu0 0.0
    %1689 = vmatpush2.msra.mxu0 0.0
    %1690 = vmatprep.subr.mxu0 0.0
    %1691 = vmatpush2.msra.mxu0 0.0
    %1692 = vmatprep.subr.mxu0 0.0
    %1693 = vmatpush2.msra.mxu0 0.0
    %1694 = vmatprep.mubr.f32.mxu0 0.0
    %1695 = vmatmul.mubr.f32.gmra.mxu0 %v1625
    %v1696 = vpop.f32.mrf.mxu0
    %v1697 = vadd.f32 0.0, %v1696
    %v1698 = vpop.f32.mrf.mxu0
    %1699 = vmatprep.mubr.f32.mxu0 0.0
    %1700 = vmatmul.mubr.f32.gmra.mxu0 %v1628
    %v1701 = vpop.f32.mrf.mxu0
    %v1702 = vadd.f32 0.0, %v1701
    %v1703 = vpop.f32.mrf.mxu0
    %1704 = vdwg.mxu0
    %v1706 = vsel %vm1373, %v1459, 0
    %v1709 = vsel %vm1373, %v1461, 0
    %1711 = vmatprep.subr.mxu0 0.0
    %1712 = vmatpush1.msra.mxu0 0.0
    %1713 = vmatprep.subr.mxu0 0.0
    %1714 = vmatpush1.msra.mxu0 0.0
    %1715 = vmatprep.subr.mxu0 0.0
    %1716 = vmatpush1.msra.mxu0 0.0
    %1717 = vmatprep.subr.mxu0 0.0
    %1718 = vmatpush1.msra.mxu0 0.0
    %1719 = vmatprep.subr.mxu0 0.0
    %1720 = vmatpush1.msra.mxu0 0.0
    %1721 = vmatprep.subr.mxu0 0.0
    %1722 = vmatpush1.msra.mxu0 0.0
    %1723 = vmatprep.subr.mxu0 0.0
    %1724 = vmatpush1.msra.mxu0 0.0
    %1725 = vmatprep.subr.mxu0 0.0
    %1726 = vmatpush1.msra.mxu0 0.0
    %1727 = vmatprep.subr.mxu0 0.0
    %1728 = vmatpush1.msra.mxu0 0.0
    %1729 = vmatprep.subr.mxu0 0.0
    %1730 = vmatpush1.msra.mxu0 0.0
    %1731 = vmatprep.subr.mxu0 0.0
    %1732 = vmatpush1.msra.mxu0 0.0
    %1733 = vmatprep.subr.mxu0 0.0
    %1734 = vmatpush1.msra.mxu0 0.0
    %1735 = vmatprep.subr.mxu0 0.0
    %1736 = vmatpush1.msra.mxu0 0.0
    %1737 = vmatprep.subr.mxu0 0.0
    %1738 = vmatpush1.msra.mxu0 0.0
    %1739 = vmatprep.subr.mxu0 0.0
    %1740 = vmatpush1.msra.mxu0 %v1023
    %1741 = vmatprep.subr.mxu0 0.0
    %1742 = vmatpush1.msra.mxu0 %v955
    %1743 = vmatprep.subr.mxu0 0.0
    %1744 = vmatpush2.msra.mxu0 0.0
    %1745 = vmatprep.subr.mxu0 0.0
    %1746 = vmatpush2.msra.mxu0 0.0
    %1747 = vmatprep.subr.mxu0 0.0
    %1748 = vmatpush2.msra.mxu0 0.0
    %1749 = vmatprep.subr.mxu0 0.0
    %1750 = vmatpush2.msra.mxu0 0.0
    %1751 = vmatprep.subr.mxu0 0.0
    %1752 = vmatpush2.msra.mxu0 0.0
    %1753 = vmatprep.subr.mxu0 0.0
    %1754 = vmatpush2.msra.mxu0 0.0
    %1755 = vmatprep.subr.mxu0 0.0
    %1756 = vmatpush2.msra.mxu0 0.0
    %1757 = vmatprep.subr.mxu0 0.0
    %1758 = vmatpush2.msra.mxu0 0.0
    %1759 = vmatprep.subr.mxu0 0.0
    %1760 = vmatpush2.msra.mxu0 0.0
    %1761 = vmatprep.subr.mxu0 0.0
    %1762 = vmatpush2.msra.mxu0 0.0
    %1763 = vmatprep.subr.mxu0 0.0
    %1764 = vmatpush2.msra.mxu0 0.0
    %1765 = vmatprep.subr.mxu0 0.0
    %1766 = vmatpush2.msra.mxu0 0.0
    %1767 = vmatprep.subr.mxu0 0.0
    %1768 = vmatpush2.msra.mxu0 0.0
    %1769 = vmatprep.subr.mxu0 0.0
    %1770 = vmatpush2.msra.mxu0 0.0
    %1771 = vmatprep.subr.mxu0 0.0
    %1772 = vmatpush2.msra.mxu0 0.0
    %1773 = vmatprep.subr.mxu0 0.0
    %1774 = vmatpush2.msra.mxu0 0.0
    %1775 = vmatprep.mubr.f32.mxu0 0.0
    %1776 = vmatmul.mubr.f32.gmra.mxu0 %v1706
    %v1777 = vpop.f32.mrf.mxu0
    %v1778 = vadd.f32 0.0, %v1777
    %v1779 = vpop.f32.mrf.mxu0
    %1780 = vmatprep.mubr.f32.mxu0 0.0
    %1781 = vmatmul.mubr.f32.gmra.mxu0 %v1709
    %v1782 = vpop.f32.mrf.mxu0
    %v1783 = vadd.f32 0.0, %v1782
    %v1784 = vpop.f32.mrf.mxu0
    %1785 = vdwg.mxu0
    %v1786 = vcombine.low %v1535, %v1697
    %v1787 = vcombine.high %v1535, %v1697
    %v1789 = vunpack.c.l.s4 1983009808
    %v1790 = vunpack.c.0.s8 %v1789
    %v1791 = vlaneseq
    %v1792 = vshrl.u32 %v1791, 7
    %v1793 = vsub.s32 %v1790, %v1792
    %v1794 = vrot.slane %v1786, %v1793
    %v1796 = vunpack.c.l.s4 1983009808
    %v1797 = vunpack.c.0.s8 %v1796
    %v1798 = vlaneseq
    %v1799 = vshrl.u32 %v1798, 7
    %v1800 = vsub.s32 %v1797, %v1799
    %v1801 = vrot.slane %v1787, %v1800
    %v1802 = vcombine.low %v1616, %v1778
    %v1803 = vcombine.high %v1616, %v1778
    %v1805 = vunpack.c.l.s4 1983009808
    %v1806 = vunpack.c.0.s8 %v1805
    %v1807 = vlaneseq
    %v1808 = vshrl.u32 %v1807, 7
    %v1809 = vsub.s32 %v1806, %v1808
    %v1810 = vrot.slane %v1802, %v1809
    %v1812 = vunpack.c.l.s4 1983009808
    %v1813 = vunpack.c.0.s8 %v1812
    %v1814 = vlaneseq
    %v1815 = vshrl.u32 %v1814, 7
    %v1816 = vsub.s32 %v1813, %v1815
    %v1817 = vrot.slane %v1803, %v1816
    %v1818 = vcombine.low %v1794, %v1810
    %v1819 = vcombine.high %v1794, %v1810
    %v1821 = vunpack.c.l.s4 1934713408
    %v1822 = vunpack.c.0.s8 %v1821
    %v1823 = vlaneseq
    %v1824 = vshrl.u32 %v1823, 7
    %v1825 = vsub.s32 %v1822, %v1824
    %v1826 = vrot.slane %v1818, %v1825
    %v1828 = vunpack.c.l.s4 1934713408
    %v1829 = vunpack.c.0.s8 %v1828
    %v1830 = vlaneseq
    %v1831 = vshrl.u32 %v1830, 7
    %v1832 = vsub.s32 %v1829, %v1831
    %v1833 = vrot.slane %v1819, %v1832
    %v1834 = vcombine.low %v1801, %v1817
    %v1835 = vcombine.high %v1801, %v1817
    %v1837 = vunpack.c.l.s4 1934713408
    %v1838 = vunpack.c.0.s8 %v1837
    %v1839 = vlaneseq
    %v1840 = vshrl.u32 %v1839, 7
    %v1841 = vsub.s32 %v1838, %v1840
    %v1842 = vrot.slane %v1834, %v1841
    %v1844 = vunpack.c.l.s4 1934713408
    %v1845 = vunpack.c.0.s8 %v1844
    %v1846 = vlaneseq
    %v1847 = vshrl.u32 %v1846, 7
    %v1848 = vsub.s32 %v1845, %v1847
    %v1849 = vrot.slane %v1835, %v1848
    %v1850 = vcombine.high %v1826, 0.0
    %v1851 = vcombine.high %v1833, 0.0
    %v1852 = vcombine.high %v1842, 0.0
    %v1853 = vcombine.high %v1849, 0.0
    %v1854 = vcombine.low %v1540, %v1702
    %v1855 = vcombine.high %v1540, %v1702
    %v1857 = vunpack.c.l.s4 1983009808
    %v1858 = vunpack.c.0.s8 %v1857
    %v1859 = vlaneseq
    %v1860 = vshrl.u32 %v1859, 7
    %v1861 = vsub.s32 %v1858, %v1860
    %v1862 = vrot.slane %v1854, %v1861
    %v1864 = vunpack.c.l.s4 1983009808
    %v1865 = vunpack.c.0.s8 %v1864
    %v1866 = vlaneseq
    %v1867 = vshrl.u32 %v1866, 7
    %v1868 = vsub.s32 %v1865, %v1867
    %v1869 = vrot.slane %v1855, %v1868
    %v1870 = vcombine.low %v1621, %v1783
    %v1871 = vcombine.high %v1621, %v1783
    %v1873 = vunpack.c.l.s4 1983009808
    %v1874 = vunpack.c.0.s8 %v1873
    %v1875 = vlaneseq
    %v1876 = vshrl.u32 %v1875, 7
    %v1877 = vsub.s32 %v1874, %v1876
    %v1878 = vrot.slane %v1870, %v1877
    %v1880 = vunpack.c.l.s4 1983009808
    %v1881 = vunpack.c.0.s8 %v1880
    %v1882 = vlaneseq
    %v1883 = vshrl.u32 %v1882, 7
    %v1884 = vsub.s32 %v1881, %v1883
    %v1885 = vrot.slane %v1871, %v1884
    %v1886 = vcombine.low %v1862, %v1878
    %v1887 = vcombine.high %v1862, %v1878
    %v1889 = vunpack.c.l.s4 1934713408
    %v1890 = vunpack.c.0.s8 %v1889
    %v1891 = vlaneseq
    %v1892 = vshrl.u32 %v1891, 7
    %v1893 = vsub.s32 %v1890, %v1892
    %v1894 = vrot.slane %v1886, %v1893
    %v1896 = vunpack.c.l.s4 1934713408
    %v1897 = vunpack.c.0.s8 %v1896
    %v1898 = vlaneseq
    %v1899 = vshrl.u32 %v1898, 7
    %v1900 = vsub.s32 %v1897, %v1899
    %v1901 = vrot.slane %v1887, %v1900
    %v1902 = vcombine.low %v1869, %v1885
    %v1903 = vcombine.high %v1869, %v1885
    %v1905 = vunpack.c.l.s4 1934713408
    %v1906 = vunpack.c.0.s8 %v1905
    %v1907 = vlaneseq
    %v1908 = vshrl.u32 %v1907, 7
    %v1909 = vsub.s32 %v1906, %v1908
    %v1910 = vrot.slane %v1902, %v1909
    %v1912 = vunpack.c.l.s4 1934713408
    %v1913 = vunpack.c.0.s8 %v1912
    %v1914 = vlaneseq
    %v1915 = vshrl.u32 %v1914, 7
    %v1916 = vsub.s32 %v1913, %v1915
    %v1917 = vrot.slane %v1903, %v1916
    %v1918 = vcombine.high %v1894, 0.0
    %v1919 = vcombine.high %v1901, 0.0
    %v1920 = vcombine.high %v1910, 0.0
    %v1921 = vcombine.high %v1917, 0.0
    %v1922 = vcombine.low %v1826, %v1833
    %v1924 = vunpack.c.l.s4 1983009808
    %v1925 = vunpack.c.0.s8 %v1924
    %v1926 = vlaneseq
    %v1927 = vshrl.u32 %v1926, 7
    %v1928 = vsub.s32 %v1925, %v1927
    %v1929 = vrot.slane %v1922, %v1928
    %v1930 = vcombine.low %v1850, %v1851
    %v1932 = vunpack.c.l.s4 1983009808
    %v1933 = vunpack.c.0.s8 %v1932
    %v1934 = vlaneseq
    %v1935 = vshrl.u32 %v1934, 7
    %v1936 = vsub.s32 %v1933, %v1935
    %v1937 = vrot.slane %v1930, %v1936
    %v1938 = vcombine.low %v1842, %v1849
    %v1940 = vunpack.c.l.s4 1983009808
    %v1941 = vunpack.c.0.s8 %v1940
    %v1942 = vlaneseq
    %v1943 = vshrl.u32 %v1942, 7
    %v1944 = vsub.s32 %v1941, %v1943
    %v1945 = vrot.slane %v1938, %v1944
    %v1946 = vcombine.low %v1852, %v1853
    %v1948 = vunpack.c.l.s4 1983009808
    %v1949 = vunpack.c.0.s8 %v1948
    %v1950 = vlaneseq
    %v1951 = vshrl.u32 %v1950, 7
    %v1952 = vsub.s32 %v1949, %v1951
    %v1953 = vrot.slane %v1946, %v1952
    %v1954 = vcombine.low %v1929, %v1937
    %v1955 = vcombine.high %v1929, %v1937
    %v1957 = vunpack.c.l.s4 1934713408
    %v1958 = vunpack.c.0.s8 %v1957
    %v1959 = vlaneseq
    %v1960 = vshrl.u32 %v1959, 7
    %v1961 = vsub.s32 %v1958, %v1960
    %v1962 = vrot.slane %v1954, %v1961
    %v1964 = vunpack.c.l.s4 1934713408
    %v1965 = vunpack.c.0.s8 %v1964
    %v1966 = vlaneseq
    %v1967 = vshrl.u32 %v1966, 7
    %v1968 = vsub.s32 %v1965, %v1967
    %v1969 = vrot.slane %v1955, %v1968
    %v1970 = vcombine.low %v1945, %v1953
    %v1971 = vcombine.high %v1945, %v1953
    %v1973 = vunpack.c.l.s4 1934713408
    %v1974 = vunpack.c.0.s8 %v1973
    %v1975 = vlaneseq
    %v1976 = vshrl.u32 %v1975, 7
    %v1977 = vsub.s32 %v1974, %v1976
    %v1978 = vrot.slane %v1970, %v1977
    %v1980 = vunpack.c.l.s4 1934713408
    %v1981 = vunpack.c.0.s8 %v1980
    %v1982 = vlaneseq
    %v1983 = vshrl.u32 %v1982, 7
    %v1984 = vsub.s32 %v1981, %v1983
    %v1985 = vrot.slane %v1971, %v1984
    %v1986 = vcombine.low %v1962, %v1978
    %v1987 = vcombine.high %v1962, %v1978
    %v1988 = vcombine.low %v1969, %v1985
    %v1989 = vcombine.high %v1969, %v1985
    %v1990 = vcombine.low %v1894, %v1901
    %v1992 = vunpack.c.l.s4 1983009808
    %v1993 = vunpack.c.0.s8 %v1992
    %v1994 = vlaneseq
    %v1995 = vshrl.u32 %v1994, 7
    %v1996 = vsub.s32 %v1993, %v1995
    %v1997 = vrot.slane %v1990, %v1996
    %v1998 = vcombine.low %v1918, %v1919
    %v2000 = vunpack.c.l.s4 1983009808
    %v2001 = vunpack.c.0.s8 %v2000
    %v2002 = vlaneseq
    %v2003 = vshrl.u32 %v2002, 7
    %v2004 = vsub.s32 %v2001, %v2003
    %v2005 = vrot.slane %v1998, %v2004
    %v2006 = vcombine.low %v1910, %v1917
    %v2008 = vunpack.c.l.s4 1983009808
    %v2009 = vunpack.c.0.s8 %v2008
    %v2010 = vlaneseq
    %v2011 = vshrl.u32 %v2010, 7
    %v2012 = vsub.s32 %v2009, %v2011
    %v2013 = vrot.slane %v2006, %v2012
    %v2014 = vcombine.low %v1920, %v1921
    %v2016 = vunpack.c.l.s4 1983009808
    %v2017 = vunpack.c.0.s8 %v2016
    %v2018 = vlaneseq
    %v2019 = vshrl.u32 %v2018, 7
    %v2020 = vsub.s32 %v2017, %v2019
    %v2021 = vrot.slane %v2014, %v2020
    %v2022 = vcombine.low %v1997, %v2005
    %v2023 = vcombine.high %v1997, %v2005
    %v2025 = vunpack.c.l.s4 1934713408
    %v2026 = vunpack.c.0.s8 %v2025
    %v2027 = vlaneseq
    %v2028 = vshrl.u32 %v2027, 7
    %v2029 = vsub.s32 %v2026, %v2028
    %v2030 = vrot.slane %v2022, %v2029
    %v2032 = vunpack.c.l.s4 1934713408
    %v2033 = vunpack.c.0.s8 %v2032
    %v2034 = vlaneseq
    %v2035 = vshrl.u32 %v2034, 7
    %v2036 = vsub.s32 %v2033, %v2035
    %v2037 = vrot.slane %v2023, %v2036
    %v2038 = vcombine.low %v2013, %v2021
    %v2039 = vcombine.high %v2013, %v2021
    %v2041 = vunpack.c.l.s4 1934713408
    %v2042 = vunpack.c.0.s8 %v2041
    %v2043 = vlaneseq
    %v2044 = vshrl.u32 %v2043, 7
    %v2045 = vsub.s32 %v2042, %v2044
    %v2046 = vrot.slane %v2038, %v2045
    %v2048 = vunpack.c.l.s4 1934713408
    %v2049 = vunpack.c.0.s8 %v2048
    %v2050 = vlaneseq
    %v2051 = vshrl.u32 %v2050, 7
    %v2052 = vsub.s32 %v2049, %v2051
    %v2053 = vrot.slane %v2039, %v2052
    %v2054 = vcombine.low %v2030, %v2046
    %v2055 = vcombine.high %v2030, %v2046
    %v2056 = vcombine.low %v2037, %v2053
    %v2057 = vcombine.high %v2037, %v2053
    %2060 = vrot.lane.b32.xlu0 %v1987, 8
    %v2061 = vpop.permute.xlu0 %2060
    %2062 = vrot.lane.b32.xlu0 %v2055, 8
    %v2063 = vpop.permute.xlu0 %2062
    %2068 = vrot.lane.b32.xlu0 %v1988, 16
    %v2069 = vpop.permute.xlu0 %2068
    %2070 = vrot.lane.b32.xlu0 %v2056, 16
    %v2071 = vpop.permute.xlu0 %2070
    %2076 = vrot.lane.b32.xlu0 %v1989, 24
    %v2077 = vpop.permute.xlu0 %2076
    %2078 = vrot.lane.b32.xlu0 %v2057, 24
    %v2079 = vpop.permute.xlu0 %2078
    %v2082 = vsel %vm1024, %v1986, %v2061
    %v2083 = vsel %vm1024, %v2054, %v2063
    %v2084 = vsel %vm1373, %v2082, %v2069
    %v2085 = vsel %vm1373, %v2083, %v2071
    %vm2086 = vcmask 195584
    %v2087 = vsel %vm2086, %v2084, %v2077
    %v2088 = vsel %vm2086, %v2085, %v2079
    %v2089 = vlaneseq
    %v2090 = vshrl.u32 %v2089, 7
    %v2091 = vsub.s32 0, %v2090
    %v2092 = vrot.slane %v47, %v2091
    %v2094 = vsel %vm58, %v2087, 0
    %v2097 = vsel %vm58, %v2088, 0
    %2099 = vmatprep.subr.mxu0 0.0
    %2100 = vmatpush1.msra.mxu0 0.0
    %2101 = vmatprep.subr.mxu0 0.0
    %2102 = vmatpush1.msra.mxu0 0.0
    %2103 = vmatprep.subr.mxu0 0.0
    %2104 = vmatpush1.msra.mxu0 0.0
    %2105 = vmatprep.subr.mxu0 0.0
    %2106 = vmatpush1.msra.mxu0 0.0
    %2107 = vmatprep.subr.mxu0 0.0
    %2108 = vmatpush1.msra.mxu0 0.0
    %2109 = vmatprep.subr.mxu0 0.0
    %2110 = vmatpush1.msra.mxu0 0.0
    %2111 = vmatprep.subr.mxu0 0.0
    %2112 = vmatpush1.msra.mxu0 0.0
    %2113 = vmatprep.subr.mxu0 0.0
    %2114 = vmatpush1.msra.mxu0 0.0
    %2115 = vmatprep.subr.mxu0 0.0
    %2116 = vmatpush1.msra.mxu0 0.0
    %2117 = vmatprep.subr.mxu0 0.0
    %2118 = vmatpush1.msra.mxu0 0.0
    %2119 = vmatprep.subr.mxu0 0.0
    %2120 = vmatpush1.msra.mxu0 0.0
    %2121 = vmatprep.subr.mxu0 0.0
    %2122 = vmatpush1.msra.mxu0 0.0
    %2123 = vmatprep.subr.mxu0 0.0
    %2124 = vmatpush1.msra.mxu0 %v51
    %2125 = vmatprep.subr.mxu0 0.0
    %2126 = vmatpush1.msra.mxu0 %v50
    %2127 = vmatprep.subr.mxu0 0.0
    %2128 = vmatpush1.msra.mxu0 %v49
    %2129 = vmatprep.subr.mxu0 0.0
    %2130 = vmatpush1.msra.mxu0 %v48
    %2131 = vmatprep.subr.mxu0 0.0
    %2132 = vmatpush2.msra.mxu0 0.0
    %2133 = vmatprep.subr.mxu0 0.0
    %2134 = vmatpush2.msra.mxu0 0.0
    %2135 = vmatprep.subr.mxu0 0.0
    %2136 = vmatpush2.msra.mxu0 0.0
    %2137 = vmatprep.subr.mxu0 0.0
    %2138 = vmatpush2.msra.mxu0 0.0
    %2139 = vmatprep.subr.mxu0 0.0
    %2140 = vmatpush2.msra.mxu0 0.0
    %2141 = vmatprep.subr.mxu0 0.0
    %2142 = vmatpush2.msra.mxu0 0.0
    %2143 = vmatprep.subr.mxu0 0.0
    %2144 = vmatpush2.msra.mxu0 0.0
    %2145 = vmatprep.subr.mxu0 0.0
    %2146 = vmatpush2.msra.mxu0 0.0
    %2147 = vmatprep.subr.mxu0 0.0
    %2148 = vmatpush2.msra.mxu0 0.0
    %2149 = vmatprep.subr.mxu0 0.0
    %2150 = vmatpush2.msra.mxu0 0.0
    %2151 = vmatprep.subr.mxu0 0.0
    %2152 = vmatpush2.msra.mxu0 0.0
    %2153 = vmatprep.subr.mxu0 0.0
    %2154 = vmatpush2.msra.mxu0 0.0
    %2155 = vmatprep.subr.mxu0 0.0
    %2156 = vmatpush2.msra.mxu0 0.0
    %2157 = vmatprep.subr.mxu0 0.0
    %2158 = vmatpush2.msra.mxu0 0.0
    %2159 = vmatprep.subr.mxu0 0.0
    %2160 = vmatpush2.msra.mxu0 0.0
    %2161 = vmatprep.subr.mxu0 0.0
    %2162 = vmatpush2.msra.mxu0 0.0
    %2163 = vmatprep.mubr.f32.mxu0 0.0
    %2164 = vmatmul.mubr.f32.gmra.mxu0 %v2094
    %v2165 = vpop.f32.mrf.mxu0
    %v2166 = vadd.f32 %v2092, %v2165
    %v2167 = vpop.f32.mrf.mxu0
    %2168 = vmatprep.mubr.f32.mxu0 0.0
    %2169 = vmatmul.mubr.f32.gmra.mxu0 %v2097
    %v2170 = vpop.f32.mrf.mxu0
    %v2171 = vadd.f32 %v2092, %v2170
    %v2172 = vpop.f32.mrf.mxu0
    %2173 = vdwg.mxu0
    %2174 = vst.msk [vmem:[#allocation7] sm:$0xff] %vm58, %v2166
    %2175 = vst.msk [vmem:[#allocation7 + $0x8] sm:$0xff] %vm58, %v2171
    // Predicated region
    $region18: #{multi_head_attention.1} parent=1 // pred_check
      _
    $region19: #{multi_head_attention.1} parent=1 // pred_check_branch
      %2177 = sbr.rel (0) target = $region21
    $region20: #{multi_head_attention.1} parent=1 // pred_region
      %s2179 = ssub.s32 256, 256
      %2180 = vsyncadd [#allocation4], %s2179
      %s2181 = sshll.u32 [#allocation7], 4
      %s2182 = int_to_ptr.vmem [resolvable:$true] %s2181
      %2187 = dma.vmem_to_hbm [thread:$0]  %s2182, 256, %s2, [#allocation4], 128, 128, 8
    $region21: #{multi_head_attention.1} parent=1 // pred_fallthru
      _
    // Predicated region
    $region22: #{multi_head_attention.1} parent=1 // pred_check
      _
    $region23: #{multi_head_attention.1} parent=1 // pred_check_branch
      %2189 = sbr.rel (0) target = $region25
    $region24: #{multi_head_attention.1} parent=1 // pred_region
      %2190 = dma.done [#allocation4], 256
    $region25: #{multi_head_attention.1} parent=1 // pred_fallthru
      _
    %2191 = vsyncpa [#allocation3], 1
    %2192 = vsyncpa [#allocation6], 1
    %2193 = vsyncpa [#allocation4], 1

</llo_original>
